<compile_context>
chip_gen: v7x
topology: tpu7x:2x2x1
jax: 0.10.0
libtpu: 0.0.40
codegen_flags: <defaults>
</compile_context>

<pallas_src>
import functools

import jax
import jax.numpy as jnp
import numpy as np
from jax.experimental import pallas as pl
from jax.experimental.pallas import tpu as pltpu

EPS = 1e-5  # nn.LayerNorm default eps


def _round_up(x, m):
    return (x + m - 1) // m * m


# ----------------------------------- kernel ----------------------------------

def conv1d_block_kernel(x_ref, halo_ref, w1_ref, c1_ref, wmid_ref, c2_ref,
                        wsk_ref, bsk_ref, alpha_ref, skip_ref, out_ref, *, T):
    Cin, LT = x_ref.shape
    G = wmid_ref.shape[1]
    mxu_dtype = w1_ref.dtype

    x = x_ref[...]                       # (Cin, LT) f32
    halo = halo_ref[...]                 # (Cin, 2)  f32: [left-of-tile, right-of-tile]

    a1 = alpha_ref[:, 0:1]
    a2 = alpha_ref[:, 1:2]
    b1 = c1_ref[:, 0:1]
    g1 = c1_ref[:, 1:2]
    be1 = c1_ref[:, 2:3]

    # stage 1: conv1x1 -> PReLU -> cLN (purely per-frame, so the halo columns
    # are recomputed here instead of overlapping input tiles)
    def stage1(v):
        y = jnp.dot(w1_ref[...], v.astype(mxu_dtype),
                    preferred_element_type=jnp.float32) + b1
        y = jnp.where(y >= 0, y, a1 * y)                       # PReLU (shared slope)
        inv_c = 1.0 / y.shape[0]
        mu = jnp.sum(y, axis=0, keepdims=True) * inv_c
        ex2 = jnp.sum(y * y, axis=0, keepdims=True) * inv_c
        r = jax.lax.rsqrt(ex2 - mu * mu + EPS)                 # one-pass cLN, EUP rsqrt
        return g1 * ((y - mu) * r) + be1

    y = stage1(x)                        # (Cc, LT) f32
    y_h = stage1(halo)                   # (Cc, 2)  f32

    # scalar time offset of this tile inside its sample (no vector modulo)
    pos0 = pl.program_id(1) * LT
    lane = jax.lax.broadcasted_iota(jnp.int32, (1, LT), 1)
    pos = pos0 + lane
    have_prev = pos > 0
    have_next = pos < (T - 1)
    first_lane = lane == 0
    last_lane = lane == (LT - 1)

    # K=3 neighbours via XLU rolls, halo column spliced at the tile edges,
    # sample/pad boundaries masked to zero (conv padding).
    y_prev = pltpu.roll(y, shift=1, axis=1)          # y_prev[:, i] = y[:, i-1]
    y_prev = jnp.where(first_lane, y_h[:, 0:1], y_prev)
    y_prev = jnp.where(have_prev, y_prev, 0.0)
    y_next = pltpu.roll(y, shift=LT - 1, axis=1)     # y_next[:, i] = y[:, i+1]
    y_next = jnp.where(last_lane, y_h[:, 1:2], y_next)
    y_next = jnp.where(have_next, y_next, 0.0)

    yp = y_prev.astype(mxu_dtype)
    yc = y.astype(mxu_dtype)
    yn = y_next.astype(mxu_dtype)

    c2a = c2_ref[0]                      # (G, 3): [bias, gamma, beta] shuff branch
    c2b = c2_ref[1]                      # (G, 3): [bias, gamma, beta] depthwise branch

    # wmid rows: [2k + 0] = shuffgroupconv tap k, [2k + 1] = (W2 * wd_k) tap k.
    # Three accumulating dots per branch — no 3*Cc concat is materialized.
    def branch(h, bias):
        acc = jnp.dot(wmid_ref[0 + h], yp, preferred_element_type=jnp.float32)
        acc = acc + jnp.dot(wmid_ref[2 + h], yc, preferred_element_type=jnp.float32)
        acc = acc + jnp.dot(wmid_ref[4 + h], yn, preferred_element_type=jnp.float32)
        return acc + bias

    mid_a = branch(0, c2a[:, 0:1])       # (G, LT) shuffgroupconv branch
    mid_b = branch(1, c2b[:, 0:1])       # (G, LT) depthwise -> conv1x1_2 branch

    # gated activation, computed in halves (no (2G, LT) temporaries / concat)
    up = jnp.tanh(mid_a) * jax.nn.sigmoid(mid_b)
    dn = jax.nn.sigmoid(mid_a) * jnp.tanh(mid_b)
    up = jnp.where(up >= 0, up, a2 * up)              # PReLU2
    dn = jnp.where(dn >= 0, dn, a2 * dn)

    # cLN over the full 2G channels, stats accumulated across the two halves
    inv_c2 = 1.0 / (2 * G)
    mu = (jnp.sum(up, axis=0, keepdims=True)
          + jnp.sum(dn, axis=0, keepdims=True)) * inv_c2
    ex2 = (jnp.sum(up * up, axis=0, keepdims=True)
           + jnp.sum(dn * dn, axis=0, keepdims=True)) * inv_c2
    r = jax.lax.rsqrt(ex2 - mu * mu + EPS)
    up_n = c2a[:, 1:2] * ((up - mu) * r) + c2a[:, 2:3]
    dn_n = c2b[:, 1:2] * ((dn - mu) * r) + c2b[:, 2:3]

    # fused sconv + skip_out projection, split by y2 half
    osk = (jnp.dot(wsk_ref[0], up_n.astype(mxu_dtype), preferred_element_type=jnp.float32)
           + jnp.dot(wsk_ref[1], dn_n.astype(mxu_dtype), preferred_element_type=jnp.float32)
           + bsk_ref[...])                                        # (Cin+Sc, LT)
    out_ref[...] = x + osk[:Cin]          # residual (f32)
    skip_ref[...] = osk[Cin:]


# ----------------------------------- wrapper ---------------------------------

def conv1d_block(x, params, lane_block=1024, mxu_dtype=jnp.bfloat16,
                 vmem_limit_bytes=48 * 1024 * 1024):
    """x: (N, Cin, T) float32. Returns (skip (N, Sc, T), out (N, Cin, T))."""
    N, Cin, T = x.shape
    G = params["Wg"].shape[1]
    Sc = params["Wk"].shape[0]
    f32 = jnp.float32

    # ---- host-side, one-time parameter fusion/packing ----
    W1 = params["W1"].astype(mxu_dtype)                                   # (Cc, Cin)
    C1 = jnp.concatenate([params["b1"], params["g1"], params["be1"]],
                         axis=1).astype(f32)                              # (Cc, 3)

    Wg = params["Wg"].astype(f32)                                         # (3, G, Cc)
    W2 = params["W2"].astype(f32)                                         # (G, Cc)
    Wd = params["Wd"][:, :, 0].astype(f32)                                # (3, Cc)
    Wmid = jnp.stack([Wg[0], W2 * Wd[0][None, :],
                      Wg[1], W2 * Wd[1][None, :],
                      Wg[2], W2 * Wd[2][None, :]],
                     axis=0).astype(mxu_dtype)                            # (6, G, Cc)

    bmid_b = params["b2"] + W2 @ params["bd"]                             # (G, 1)
    C2 = jnp.stack(
        [jnp.concatenate([params["bg"], params["g2"][:G], params["be2"][:G]], axis=1),
         jnp.concatenate([bmid_b, params["g2"][G:], params["be2"][G:]], axis=1)],
        axis=0).astype(f32)                                               # (2, G, 3)

    Wsk_full = jnp.concatenate([params["Ws"], params["Wk"]], axis=0)      # (Cin+Sc, 2G)
    Wsk = jnp.stack([Wsk_full[:, :G], Wsk_full[:, G:]],
                    axis=0).astype(mxu_dtype)                             # (2, Cin+Sc, G)
    bsk = jnp.concatenate([params["bs"], params["bk"]], axis=0).astype(f32)  # (Cin+Sc, 1)
    alphas = jnp.concatenate([params["a1"], params["a2"]], axis=1).astype(f32)  # (1, 2)

    # ---- lane tiling: native (N, C, T) layout, pad only the time axis ----
    LT = min(_round_up(T, 128), int(lane_block))   # lane tile width; sweep per chip
    Tp = _round_up(T, LT)
    num_tiles = Tp // LT
    x_p = jnp.pad(x.astype(f32), ((0, 0), (0, 0), (0, Tp - T)))           # (N, Cin, Tp)

    # one x column either side of each tile (stage-1 recomputes them in-kernel)
    idx = jnp.arange(num_tiles)
    left = jnp.maximum(idx * LT - 1, 0)
    right = jnp.minimum((idx + 1) * LT, Tp - 1)
    halos = jnp.stack([x_p[:, :, left], x_p[:, :, right]], axis=-1)       # (N, Cin, nt, 2)
    halos = jnp.transpose(halos, (0, 2, 1, 3))                            # (N, nt, Cin, 2)

    kernel = functools.partial(conv1d_block_kernel, T=T)

    skip_p, out_p = pl.pallas_call(
        kernel,
        out_shape=(jax.ShapeDtypeStruct((N, Sc, Tp), f32),
                   jax.ShapeDtypeStruct((N, Cin, Tp), f32)),
        grid_spec=pltpu.PrefetchScalarGridSpec(
            num_scalar_prefetch=0,
            grid=(N, num_tiles),
            in_specs=[
                pl.BlockSpec((None, Cin, LT), lambda n, j: (n, 0, j)),      # x tile
                pl.BlockSpec((None, None, Cin, 2), lambda n, j: (n, j, 0, 0)),  # halo
                pl.BlockSpec(W1.shape, lambda n, j: (0, 0)),
                pl.BlockSpec(C1.shape, lambda n, j: (0, 0)),
                pl.BlockSpec(Wmid.shape, lambda n, j: (0, 0, 0)),
                pl.BlockSpec(C2.shape, lambda n, j: (0, 0, 0)),
                pl.BlockSpec(Wsk.shape, lambda n, j: (0, 0, 0)),
                pl.BlockSpec(bsk.shape, lambda n, j: (0, 0)),
                pl.BlockSpec(alphas.shape, lambda n, j: (0, 0)),
            ],
            out_specs=[
                pl.BlockSpec((None, Sc, LT), lambda n, j: (n, 0, j)),
                pl.BlockSpec((None, Cin, LT), lambda n, j: (n, 0, j)),
            ]),
        compiler_params=pltpu.CompilerParams(
            dimension_semantics=("parallel", "parallel"),
            vmem_limit_bytes=vmem_limit_bytes),
    )(x_p, halos, W1, C1, Wmid, C2, Wsk, bsk, alphas)

    if Tp != T:
        skip_p = skip_p[:, :, :T]
        out_p = out_p[:, :, :T]
    return skip_p, out_p


# --------------------------- pure-JAX reference -------------------------------
# Mirrors the original PyTorch forward op-by-op (unfused).

def conv1d_block_ref(x, p):
    def cln(y, g, b):
        mu = jnp.mean(y, axis=0, keepdims=True)
        var = jnp.mean((y - mu) ** 2, axis=0, keepdims=True)
        return g * (y - mu) / jnp.sqrt(var + EPS) + b

    def prelu(y, a):
        return jnp.where(y >= 0, y, a * y)

    def shift(y):
        z = jnp.zeros((y.shape[0], 1), y.dtype)
        return (jnp.concatenate([z, y[:, :-1]], axis=1),
                jnp.concatenate([y[:, 1:], z], axis=1))

    def one(xb):
        y = p["W1"] @ xb + p["b1"]
        y = cln(prelu(y, p["a1"]), p["g1"], p["be1"])
        yp, yn = shift(y)
        shuffcov = p["Wg"][0] @ yp + p["Wg"][1] @ y + p["Wg"][2] @ yn + p["bg"]
        d = p["Wd"][0] * yp + p["Wd"][1] * y + p["Wd"][2] * yn + p["bd"]
        d = p["W2"] @ d + p["b2"]
        y2 = jnp.concatenate([jnp.tanh(shuffcov) * jax.nn.sigmoid(d),
                              jax.nn.sigmoid(shuffcov) * jnp.tanh(d)], axis=0)
        y2 = cln(prelu(y2, p["a2"]), p["g2"], p["be2"])
        out = p["Ws"] @ y2 + p["bs"]
        skip = p["Wk"] @ y2 + p["bk"]
        return skip, xb + out

    return jax.vmap(one)(x)


# ------------------------------------ main ------------------------------------

if __name__ == "__main__":
    # Small shapes consistent with the module structure:
    #   in_channels=Cin, conv_channels=Cc, groupoutchnl=G, Sc, kernel_size=3
    N, Cin, Cc, G, Sc, T = 2, 16, 32, 16, 32, 200

    key = jax.random.PRNGKey(0)
    ks = jax.random.split(key, 16)
    s = 0.1

    params = {
        # conv1x1: Cin -> Cc
        "W1": s * jax.random.normal(ks[0], (Cc, Cin), jnp.float32),
        "b1": s * jax.random.normal(ks[1], (Cc, 1), jnp.float32),
        # prelu1 (single-parameter, PyTorch default init 0.25)
        "a1": jnp.full((1, 1), 0.25, jnp.float32),
        # cLN over Cc channels (LayerNorm default affine init)
        "g1": jnp.ones((Cc, 1), jnp.float32),
        "be1": jnp.zeros((Cc, 1), jnp.float32),
        # shuffgroupconv: Cc -> G, kernel 3, groups=1 (stored as (k, out, in))
        "Wg": s * jax.random.normal(ks[2], (3, G, Cc), jnp.float32),
        "bg": s * jax.random.normal(ks[3], (G, 1), jnp.float32),
        # dconv: depthwise over Cc, kernel 3 (stored as (k, C, 1))
        "Wd": s * jax.random.normal(ks[4], (3, Cc, 1), jnp.float32),
        "bd": s * jax.random.normal(ks[5], (Cc, 1), jnp.float32),
        # conv1x1_2: Cc -> G
        "W2": s * jax.random.normal(ks[6], (G, Cc), jnp.float32),
        "b2": s * jax.random.normal(ks[7], (G, 1), jnp.float32),
        # prelu2
        "a2": jnp.full((1, 1), 0.25, jnp.float32),
        # cLN over 2G channels
        "g2": jnp.ones((2 * G, 1), jnp.float32),
        "be2": jnp.zeros((2 * G, 1), jnp.float32),
        # sconv: 2G -> Cin
        "Ws": s * jax.random.normal(ks[8], (Cin, 2 * G), jnp.float32),
        "bs": s * jax.random.normal(ks[9], (Cin, 1), jnp.float32),
        # skip_out: 2G -> Sc
        "Wk": s * jax.random.normal(ks[10], (Sc, 2 * G), jnp.float32),
        "bk": s * jax.random.normal(ks[11], (Sc, 1), jnp.float32),
    }

    x = jax.random.normal(ks[12], (N, Cin, T), jnp.float32)
    skip_gold, out_gold = conv1d_block_ref(x, params)

    # Parity check: f32 MXU path, small lane tiles so the cross-tile halo path
    # is actually exercised (T=200 -> 2 tiles of 128 per sample).
    skip_f, out_f = conv1d_block(x, params, lane_block=128, mxu_dtype=jnp.float32)
    skip_f, out_f = jax.block_until_ready((skip_f, out_f))
    np.testing.assert_allclose(np.asarray(skip_f), np.asarray(skip_gold),
                               rtol=5e-3, atol=5e-3)
    np.testing.assert_allclose(np.asarray(out_f), np.asarray(out_gold),
                               rtol=5e-3, atol=5e-3)

    # Default fast path: bf16 MXU operands, f32 accumulation / f32 I-O.
    # Two cLN stages amplify bf16 rounding, hence the looser tolerance here.
    skip_b, out_b = conv1d_block(x, params)
    skip_b, out_b = jax.block_until_ready((skip_b, out_b))
    np.testing.assert_allclose(np.asarray(skip_b), np.asarray(skip_gold),
                               rtol=5e-2, atol=5e-2)
    np.testing.assert_allclose(np.asarray(out_b), np.asarray(out_gold),
                               rtol=5e-2, atol=5e-2)

    print("KERNEL_OK")
</pallas_src>

<mosaic_0001>
module attributes {stable_mosaic.version = 11 : i64} {
  func.func @conv1d_block_kernel(%arg0: i32, %arg1: i32, %arg2: memref<1x16x128xf32, #tpu.memory_space<vmem>>, %arg3: memref<1x1x16x2xf32, #tpu.memory_space<vmem>>, %arg4: memref<32x16xf32, #tpu.memory_space<vmem>>, %arg5: memref<32x3xf32, #tpu.memory_space<vmem>>, %arg6: memref<6x16x32xf32, #tpu.memory_space<vmem>>, %arg7: memref<2x16x3xf32, #tpu.memory_space<vmem>>, %arg8: memref<2x48x16xf32, #tpu.memory_space<vmem>>, %arg9: memref<48x1xf32, #tpu.memory_space<vmem>>, %arg10: memref<1x2xf32, #tpu.memory_space<vmem>>, %arg11: memref<1x32x128xf32, #tpu.memory_space<vmem>>, %arg12: memref<1x16x128xf32, #tpu.memory_space<vmem>>) attributes {dimension_semantics = [#tpu.dimension_semantics<parallel>, #tpu.dimension_semantics<parallel>], iteration_bounds = array<i64: 2, 2>, scalar_prefetch = 0 : i64, scratch_operands = 0 : i64, tpu.core_type = #tpu.core_type<tc>, window_params = [{transform_indices = @transform_0, window_bounds = array<i64: 1, 16, 128>}, {transform_indices = @transform_1, window_bounds = array<i64: 1, 1, 16, 2>}, {pipeline_mode = #tpu.pipeline_mode<synchronous>, transform_indices = @transform_2, window_bounds = array<i64: 32, 16>}, {pipeline_mode = #tpu.pipeline_mode<synchronous>, transform_indices = @transform_3, window_bounds = array<i64: 32, 3>}, {pipeline_mode = #tpu.pipeline_mode<synchronous>, transform_indices = @transform_4, window_bounds = array<i64: 6, 16, 32>}, {pipeline_mode = #tpu.pipeline_mode<synchronous>, transform_indices = @transform_5, window_bounds = array<i64: 2, 16, 3>}, {pipeline_mode = #tpu.pipeline_mode<synchronous>, transform_indices = @transform_6, window_bounds = array<i64: 2, 48, 16>}, {pipeline_mode = #tpu.pipeline_mode<synchronous>, transform_indices = @transform_7, window_bounds = array<i64: 48, 1>}, {pipeline_mode = #tpu.pipeline_mode<synchronous>, transform_indices = @transform_8, window_bounds = array<i64: 1, 2>}, {transform_indices = @transform_9, window_bounds = array<i64: 1, 32, 128>}, {transform_indices = @transform_10, window_bounds = array<i64: 1, 16, 128>}]} {
    %c0 = arith.constant 0 : index
    %c0_0 = arith.constant 0 : index
    %c0_1 = arith.constant 0 : index
    %0 = vector.load %arg2[%c0, %c0_0, %c0_1] : memref<1x16x128xf32, #tpu.memory_space<vmem>>, vector<1x16x128xf32>
    %1 = vector.shape_cast %0 : vector<1x16x128xf32> to vector<16x128xf32>
    %c0_2 = arith.constant 0 : index
    %c0_3 = arith.constant 0 : index
    %c0_4 = arith.constant 0 : index
    %c0_5 = arith.constant 0 : index
    %2 = vector.load %arg3[%c0_2, %c0_3, %c0_4, %c0_5] : memref<1x1x16x2xf32, #tpu.memory_space<vmem>>, vector<1x1x16x2xf32>
    %3 = vector.shape_cast %2 : vector<1x1x16x2xf32> to vector<16x2xf32>
    %c0_6 = arith.constant 0 : index
    %c0_7 = arith.constant 0 : index
    %4 = vector.load %arg10[%c0_6, %c0_7] : memref<1x2xf32, #tpu.memory_space<vmem>>, vector<1x1xf32>
    %c0_8 = arith.constant 0 : index
    %c1 = arith.constant 1 : index
    %5 = vector.load %arg10[%c0_8, %c1] : memref<1x2xf32, #tpu.memory_space<vmem>>, vector<1x1xf32>
    %c0_9 = arith.constant 0 : index
    %c0_10 = arith.constant 0 : index
    %6 = vector.load %arg5[%c0_9, %c0_10] : memref<32x3xf32, #tpu.memory_space<vmem>>, vector<32x1xf32>
    %c0_11 = arith.constant 0 : index
    %c1_12 = arith.constant 1 : index
    %7 = vector.load %arg5[%c0_11, %c1_12] : memref<32x3xf32, #tpu.memory_space<vmem>>, vector<32x1xf32>
    %c0_13 = arith.constant 0 : index
    %c2 = arith.constant 2 : index
    %8 = vector.load %arg5[%c0_13, %c2] : memref<32x3xf32, #tpu.memory_space<vmem>>, vector<32x1xf32>
    %c0_14 = arith.constant 0 : index
    %c0_15 = arith.constant 0 : index
    %9 = vector.load %arg4[%c0_14, %c0_15] : memref<32x16xf32, #tpu.memory_space<vmem>>, vector<32x16xf32>
    %cst = arith.constant dense<0.000000e+00> : vector<32x128xf32>
    %10 = tpu.matmul %9, %1, %cst {dimension_numbers = #tpu.dot_dimension_numbers<[1], [0], [0], [1], [0, 0, 1, 1], [], []>} : vector<32x16xf32>, vector<16x128xf32>, vector<32x128xf32> -> vector<32x128xf32>
    %11 = vector.broadcast %6 : vector<32x1xf32> to vector<32x128xf32>
    %12 = arith.addf %10, %11 : vector<32x128xf32>
    %cst_16 = arith.constant 0.000000e+00 : f32
    %13 = vector.broadcast %cst_16 : f32 to vector<32x128xf32>
    %14 = arith.cmpf oge, %12, %13 : vector<32x128xf32>
    %15 = vector.broadcast %4 : vector<1x1xf32> to vector<32x128xf32>
    %16 = arith.mulf %15, %12 : vector<32x128xf32>
    %17 = arith.select %14, %12, %16 : vector<32x128xi1>, vector<32x128xf32>
    %cst_17 = arith.constant dense<0.000000e+00> : vector<128xf32>
    %18 = vector.multi_reduction <add>, %17, %cst_17 [0] : vector<32x128xf32> to vector<128xf32>
    %19 = vector.shape_cast %18 : vector<128xf32> to vector<1x128xf32>
    %cst_18 = arith.constant 3.125000e-02 : f32
    %20 = vector.broadcast %cst_18 : f32 to vector<1x128xf32>
    %21 = arith.mulf %19, %20 : vector<1x128xf32>
    %22 = arith.mulf %17, %17 : vector<32x128xf32>
    %cst_19 = arith.constant dense<0.000000e+00> : vector<128xf32>
    %23 = vector.multi_reduction <add>, %22, %cst_19 [0] : vector<32x128xf32> to vector<128xf32>
    %24 = vector.shape_cast %23 : vector<128xf32> to vector<1x128xf32>
    %cst_20 = arith.constant 3.125000e-02 : f32
    %25 = vector.broadcast %cst_20 : f32 to vector<1x128xf32>
    %26 = arith.mulf %24, %25 : vector<1x128xf32>
    %27 = arith.mulf %21, %21 : vector<1x128xf32>
    %28 = arith.subf %26, %27 : vector<1x128xf32>
    %cst_21 = arith.constant 9.99999974E-6 : f32
    %29 = vector.broadcast %cst_21 : f32 to vector<1x128xf32>
    %30 = arith.addf %28, %29 : vector<1x128xf32>
    %31 = math.rsqrt %30 : vector<1x128xf32>
    %32 = vector.broadcast %21 : vector<1x128xf32> to vector<32x128xf32>
    %33 = arith.subf %17, %32 : vector<32x128xf32>
    %34 = vector.broadcast %31 : vector<1x128xf32> to vector<32x128xf32>
    %35 = arith.mulf %33, %34 : vector<32x128xf32>
    %36 = vector.broadcast %7 : vector<32x1xf32> to vector<32x128xf32>
    %37 = arith.mulf %36, %35 : vector<32x128xf32>
    %38 = vector.broadcast %8 : vector<32x1xf32> to vector<32x128xf32>
    %39 = arith.addf %37, %38 : vector<32x128xf32>
    %c0_22 = arith.constant 0 : index
    %c0_23 = arith.constant 0 : index
    %40 = vector.load %arg4[%c0_22, %c0_23] : memref<32x16xf32, #tpu.memory_space<vmem>>, vector<32x16xf32>
    %cst_24 = arith.constant dense<0.000000e+00> : vector<32x2xf32>
    %41 = tpu.matmul %40, %3, %cst_24 {dimension_numbers = #tpu.dot_dimension_numbers<[1], [0], [0], [1], [0, 0, 1, 1], [], []>} : vector<32x16xf32>, vector<16x2xf32>, vector<32x2xf32> -> vector<32x2xf32>
    %42 = vector.broadcast %6 : vector<32x1xf32> to vector<32x2xf32>
    %43 = arith.addf %41, %42 : vector<32x2xf32>
    %cst_25 = arith.constant 0.000000e+00 : f32
    %44 = vector.broadcast %cst_25 : f32 to vector<32x2xf32>
    %45 = arith.cmpf oge, %43, %44 : vector<32x2xf32>
    %46 = vector.broadcast %4 : vector<1x1xf32> to vector<32x2xf32>
    %47 = arith.mulf %46, %43 : vector<32x2xf32>
    %48 = arith.select %45, %43, %47 : vector<32x2xi1>, vector<32x2xf32>
    %cst_26 = arith.constant dense<0.000000e+00> : vector<2xf32>
    %49 = vector.multi_reduction <add>, %48, %cst_26 [0] : vector<32x2xf32> to vector<2xf32>
    %50 = vector.shape_cast %49 : vector<2xf32> to vector<1x2xf32>
    %cst_27 = arith.constant 3.125000e-02 : f32
    %51 = vector.broadcast %cst_27 : f32 to vector<1x2xf32>
    %52 = arith.mulf %50, %51 : vector<1x2xf32>
    %53 = arith.mulf %48, %48 : vector<32x2xf32>
    %cst_28 = arith.constant dense<0.000000e+00> : vector<2xf32>
    %54 = vector.multi_reduction <add>, %53, %cst_28 [0] : vector<32x2xf32> to vector<2xf32>
    %55 = vector.shape_cast %54 : vector<2xf32> to vector<1x2xf32>
    %cst_29 = arith.constant 3.125000e-02 : f32
    %56 = vector.broadcast %cst_29 : f32 to vector<1x2xf32>
    %57 = arith.mulf %55, %56 : vector<1x2xf32>
    %58 = arith.mulf %52, %52 : vector<1x2xf32>
    %59 = arith.subf %57, %58 : vector<1x2xf32>
    %cst_30 = arith.constant 9.99999974E-6 : f32
    %60 = vector.broadcast %cst_30 : f32 to vector<1x2xf32>
    %61 = arith.addf %59, %60 : vector<1x2xf32>
    %62 = math.rsqrt %61 : vector<1x2xf32>
    %63 = vector.broadcast %52 : vector<1x2xf32> to vector<32x2xf32>
    %64 = arith.subf %48, %63 : vector<32x2xf32>
    %65 = vector.broadcast %62 : vector<1x2xf32> to vector<32x2xf32>
    %66 = arith.mulf %64, %65 : vector<32x2xf32>
    %67 = vector.broadcast %7 : vector<32x1xf32> to vector<32x2xf32>
    %68 = arith.mulf %67, %66 : vector<32x2xf32>
    %69 = vector.broadcast %8 : vector<32x1xf32> to vector<32x2xf32>
    %70 = arith.addf %68, %69 : vector<32x2xf32>
    %c128_i32 = arith.constant 128 : i32
    %71 = arith.muli %arg1, %c128_i32 : i32
    %72 = tpu.iota {dimensions = array<i32: 1>} : vector<1x128xi32>
    %73 = vector.broadcast %71 : i32 to vector<1x128xi32>
    %74 = arith.addi %73, %72 : vector<1x128xi32>
    %c0_i32 = arith.constant 0 : i32
    %75 = vector.broadcast %c0_i32 : i32 to vector<1x128xi32>
    %76 = arith.cmpi sgt, %74, %75 : vector<1x128xi32>
    %c199_i32 = arith.constant 199 : i32
    %77 = vector.broadcast %c199_i32 : i32 to vector<1x128xi32>
    %78 = arith.cmpi slt, %74, %77 : vector<1x128xi32>
    %c0_i32_31 = arith.constant 0 : i32
    %79 = vector.broadcast %c0_i32_31 : i32 to vector<1x128xi32>
    %80 = arith.cmpi eq, %72, %79 : vector<1x128xi32>
    %c127_i32 = arith.constant 127 : i32
    %81 = vector.broadcast %c127_i32 : i32 to vector<1x128xi32>
    %82 = arith.cmpi eq, %72, %81 : vector<1x128xi32>
    %c1_i32 = arith.constant 1 : i32
    %83 = tpu.dynamic_rotate %39 by %c1_i32 dim 1 : vector<32x128xf32>, i32 -> vector<32x128xf32>
    %84 = vector.extract_strided_slice %70 {offsets = [0, 0], sizes = [32, 1], strides = [1, 1]} : vector<32x2xf32> to vector<32x1xf32>
    %85 = vector.shape_cast %80 : vector<1x128xi1> to vector<1x128xi1>
    %86 = vector.broadcast %85 : vector<1x128xi1> to vector<32x128xi1>
    %87 = vector.shape_cast %84 : vector<32x1xf32> to vector<32x1xf32>
    %88 = vector.broadcast %87 : vector<32x1xf32> to vector<32x128xf32>
    %89 = arith.select %86, %88, %83 : vector<32x128xi1>, vector<32x128xf32>
    %cst_32 = arith.constant 0.000000e+00 : f32
    %90 = vector.shape_cast %76 : vector<1x128xi1> to vector<1x128xi1>
    %91 = vector.broadcast %90 : vector<1x128xi1> to vector<32x128xi1>
    %92 = vector.broadcast %cst_32 : f32 to vector<32x128xf32>
    %93 = arith.select %91, %89, %92 : vector<32x128xi1>, vector<32x128xf32>
    %c127_i32_33 = arith.constant 127 : i32
    %94 = tpu.dynamic_rotate %39 by %c127_i32_33 dim 1 : vector<32x128xf32>, i32 -> vector<32x128xf32>
    %95 = vector.extract_strided_slice %70 {offsets = [0, 1], sizes = [32, 1], strides = [1, 1]} : vector<32x2xf32> to vector<32x1xf32>
    %96 = vector.shape_cast %82 : vector<1x128xi1> to vector<1x128xi1>
    %97 = vector.broadcast %96 : vector<1x128xi1> to vector<32x128xi1>
    %98 = vector.shape_cast %95 : vector<32x1xf32> to vector<32x1xf32>
    %99 = vector.broadcast %98 : vector<32x1xf32> to vector<32x128xf32>
    %100 = arith.select %97, %99, %94 : vector<32x128xi1>, vector<32x128xf32>
    %cst_34 = arith.constant 0.000000e+00 : f32
    %101 = vector.shape_cast %78 : vector<1x128xi1> to vector<1x128xi1>
    %102 = vector.broadcast %101 : vector<1x128xi1> to vector<32x128xi1>
    %103 = vector.broadcast %cst_34 : f32 to vector<32x128xf32>
    %104 = arith.select %102, %100, %103 : vector<32x128xi1>, vector<32x128xf32>
    %c0_35 = arith.constant 0 : index
    %c0_36 = arith.constant 0 : index
    %c0_37 = arith.constant 0 : index
    %105 = vector.load %arg7[%c0_35, %c0_36, %c0_37] : memref<2x16x3xf32, #tpu.memory_space<vmem>>, vector<1x16x3xf32>
    %106 = vector.shape_cast %105 : vector<1x16x3xf32> to vector<16x3xf32>
    %c1_38 = arith.constant 1 : index
    %c0_39 = arith.constant 0 : index
    %c0_40 = arith.constant 0 : index
    %107 = vector.load %arg7[%c1_38, %c0_39, %c0_40] : memref<2x16x3xf32, #tpu.memory_space<vmem>>, vector<1x16x3xf32>
    %108 = vector.shape_cast %107 : vector<1x16x3xf32> to vector<16x3xf32>
    %109 = vector.extract_strided_slice %106 {offsets = [0, 0], sizes = [16, 1], strides = [1, 1]} : vector<16x3xf32> to vector<16x1xf32>
    %c0_41 = arith.constant 0 : index
    %c0_42 = arith.constant 0 : index
    %c0_43 = arith.constant 0 : index
    %110 = vector.load %arg6[%c0_41, %c0_42, %c0_43] : memref<6x16x32xf32, #tpu.memory_space<vmem>>, vector<1x16x32xf32>
    %111 = vector.shape_cast %110 : vector<1x16x32xf32> to vector<16x32xf32>
    %cst_44 = arith.constant dense<0.000000e+00> : vector<16x128xf32>
    %112 = tpu.matmul %111, %93, %cst_44 {dimension_numbers = #tpu.dot_dimension_numbers<[1], [0], [0], [1], [0, 0, 1, 1], [], []>} : vector<16x32xf32>, vector<32x128xf32>, vector<16x128xf32> -> vector<16x128xf32>
    %c2_45 = arith.constant 2 : index
    %c0_46 = arith.constant 0 : index
    %c0_47 = arith.constant 0 : index
    %113 = vector.load %arg6[%c2_45, %c0_46, %c0_47] : memref<6x16x32xf32, #tpu.memory_space<vmem>>, vector<1x16x32xf32>
    %114 = vector.shape_cast %113 : vector<1x16x32xf32> to vector<16x32xf32>
    %cst_48 = arith.constant dense<0.000000e+00> : vector<16x128xf32>
    %115 = tpu.matmul %114, %39, %cst_48 {dimension_numbers = #tpu.dot_dimension_numbers<[1], [0], [0], [1], [0, 0, 1, 1], [], []>} : vector<16x32xf32>, vector<32x128xf32>, vector<16x128xf32> -> vector<16x128xf32>
    %116 = arith.addf %112, %115 : vector<16x128xf32>
    %c4 = arith.constant 4 : index
    %c0_49 = arith.constant 0 : index
    %c0_50 = arith.constant 0 : index
    %117 = vector.load %arg6[%c4, %c0_49, %c0_50] : memref<6x16x32xf32, #tpu.memory_space<vmem>>, vector<1x16x32xf32>
    %118 = vector.shape_cast %117 : vector<1x16x32xf32> to vector<16x32xf32>
    %cst_51 = arith.constant dense<0.000000e+00> : vector<16x128xf32>
    %119 = tpu.matmul %118, %104, %cst_51 {dimension_numbers = #tpu.dot_dimension_numbers<[1], [0], [0], [1], [0, 0, 1, 1], [], []>} : vector<16x32xf32>, vector<32x128xf32>, vector<16x128xf32> -> vector<16x128xf32>
    %120 = arith.addf %116, %119 : vector<16x128xf32>
    %121 = vector.broadcast %109 : vector<16x1xf32> to vector<16x128xf32>
    %122 = arith.addf %120, %121 : vector<16x128xf32>
    %123 = vector.extract_strided_slice %108 {offsets = [0, 0], sizes = [16, 1], strides = [1, 1]} : vector<16x3xf32> to vector<16x1xf32>
    %c1_52 = arith.constant 1 : index
    %c0_53 = arith.constant 0 : index
    %c0_54 = arith.constant 0 : index
    %124 = vector.load %arg6[%c1_52, %c0_53, %c0_54] : memref<6x16x32xf32, #tpu.memory_space<vmem>>, vector<1x16x32xf32>
    %125 = vector.shape_cast %124 : vector<1x16x32xf32> to vector<16x32xf32>
    %cst_55 = arith.constant dense<0.000000e+00> : vector<16x128xf32>
    %126 = tpu.matmul %125, %93, %cst_55 {dimension_numbers = #tpu.dot_dimension_numbers<[1], [0], [0], [1], [0, 0, 1, 1], [], []>} : vector<16x32xf32>, vector<32x128xf32>, vector<16x128xf32> -> vector<16x128xf32>
    %c3 = arith.constant 3 : index
    %c0_56 = arith.constant 0 : index
    %c0_57 = arith.constant 0 : index
    %127 = vector.load %arg6[%c3, %c0_56, %c0_57] : memref<6x16x32xf32, #tpu.memory_space<vmem>>, vector<1x16x32xf32>
    %128 = vector.shape_cast %127 : vector<1x16x32xf32> to vector<16x32xf32>
    %cst_58 = arith.constant dense<0.000000e+00> : vector<16x128xf32>
    %129 = tpu.matmul %128, %39, %cst_58 {dimension_numbers = #tpu.dot_dimension_numbers<[1], [0], [0], [1], [0, 0, 1, 1], [], []>} : vector<16x32xf32>, vector<32x128xf32>, vector<16x128xf32> -> vector<16x128xf32>
    %130 = arith.addf %126, %129 : vector<16x128xf32>
    %c5 = arith.constant 5 : index
    %c0_59 = arith.constant 0 : index
    %c0_60 = arith.constant 0 : index
    %131 = vector.load %arg6[%c5, %c0_59, %c0_60] : memref<6x16x32xf32, #tpu.memory_space<vmem>>, vector<1x16x32xf32>
    %132 = vector.shape_cast %131 : vector<1x16x32xf32> to vector<16x32xf32>
    %cst_61 = arith.constant dense<0.000000e+00> : vector<16x128xf32>
    %133 = tpu.matmul %132, %104, %cst_61 {dimension_numbers = #tpu.dot_dimension_numbers<[1], [0], [0], [1], [0, 0, 1, 1], [], []>} : vector<16x32xf32>, vector<32x128xf32>, vector<16x128xf32> -> vector<16x128xf32>
    %134 = arith.addf %130, %133 : vector<16x128xf32>
    %135 = vector.broadcast %123 : vector<16x1xf32> to vector<16x128xf32>
    %136 = arith.addf %134, %135 : vector<16x128xf32>
    %137 = math.tanh %122 : vector<16x128xf32>
    %138 = arith.negf %136 : vector<16x128xf32>
    %139 = math.exp %138 : vector<16x128xf32>
    %cst_62 = arith.constant 1.000000e+00 : f32
    %140 = vector.broadcast %cst_62 : f32 to vector<16x128xf32>
    %141 = arith.addf %140, %139 : vector<16x128xf32>
    %142 = arith.divf %140, %141 : vector<16x128xf32>
    %143 = arith.mulf %137, %142 : vector<16x128xf32>
    %144 = arith.negf %122 : vector<16x128xf32>
    %145 = math.exp %144 : vector<16x128xf32>
    %cst_63 = arith.constant 1.000000e+00 : f32
    %146 = vector.broadcast %cst_63 : f32 to vector<16x128xf32>
    %147 = arith.addf %146, %145 : vector<16x128xf32>
    %148 = arith.divf %146, %147 : vector<16x128xf32>
    %149 = math.tanh %136 : vector<16x128xf32>
    %150 = arith.mulf %148, %149 : vector<16x128xf32>
    %cst_64 = arith.constant 0.000000e+00 : f32
    %151 = vector.broadcast %cst_64 : f32 to vector<16x128xf32>
    %152 = arith.cmpf oge, %143, %151 : vector<16x128xf32>
    %153 = vector.broadcast %5 : vector<1x1xf32> to vector<16x128xf32>
    %154 = arith.mulf %153, %143 : vector<16x128xf32>
    %155 = arith.select %152, %143, %154 : vector<16x128xi1>, vector<16x128xf32>
    %cst_65 = arith.constant 0.000000e+00 : f32
    %156 = vector.broadcast %cst_65 : f32 to vector<16x128xf32>
    %157 = arith.cmpf oge, %150, %156 : vector<16x128xf32>
    %158 = vector.broadcast %5 : vector<1x1xf32> to vector<16x128xf32>
    %159 = arith.mulf %158, %150 : vector<16x128xf32>
    %160 = arith.select %157, %150, %159 : vector<16x128xi1>, vector<16x128xf32>
    %cst_66 = arith.constant dense<0.000000e+00> : vector<128xf32>
    %161 = vector.multi_reduction <add>, %155, %cst_66 [0] : vector<16x128xf32> to vector<128xf32>
    %162 = vector.shape_cast %161 : vector<128xf32> to vector<1x128xf32>
    %cst_67 = arith.constant dense<0.000000e+00> : vector<128xf32>
    %163 = vector.multi_reduction <add>, %160, %cst_67 [0] : vector<16x128xf32> to vector<128xf32>
    %164 = vector.shape_cast %163 : vector<128xf32> to vector<1x128xf32>
    %165 = arith.addf %162, %164 : vector<1x128xf32>
    %cst_68 = arith.constant 3.125000e-02 : f32
    %166 = vector.broadcast %cst_68 : f32 to vector<1x128xf32>
    %167 = arith.mulf %165, %166 : vector<1x128xf32>
    %168 = arith.mulf %155, %155 : vector<16x128xf32>
    %cst_69 = arith.constant dense<0.000000e+00> : vector<128xf32>
    %169 = vector.multi_reduction <add>, %168, %cst_69 [0] : vector<16x128xf32> to vector<128xf32>
    %170 = vector.shape_cast %169 : vector<128xf32> to vector<1x128xf32>
    %171 = arith.mulf %160, %160 : vector<16x128xf32>
    %cst_70 = arith.constant dense<0.000000e+00> : vector<128xf32>
    %172 = vector.multi_reduction <add>, %171, %cst_70 [0] : vector<16x128xf32> to vector<128xf32>
    %173 = vector.shape_cast %172 : vector<128xf32> to vector<1x128xf32>
    %174 = arith.addf %170, %173 : vector<1x128xf32>
    %cst_71 = arith.constant 3.125000e-02 : f32
    %175 = vector.broadcast %cst_71 : f32 to vector<1x128xf32>
    %176 = arith.mulf %174, %175 : vector<1x128xf32>
    %177 = arith.mulf %167, %167 : vector<1x128xf32>
    %178 = arith.subf %176, %177 : vector<1x128xf32>
    %cst_72 = arith.constant 9.99999974E-6 : f32
    %179 = vector.broadcast %cst_72 : f32 to vector<1x128xf32>
    %180 = arith.addf %178, %179 : vector<1x128xf32>
    %181 = math.rsqrt %180 : vector<1x128xf32>
    %182 = vector.extract_strided_slice %106 {offsets = [0, 1], sizes = [16, 1], strides = [1, 1]} : vector<16x3xf32> to vector<16x1xf32>
    %183 = vector.broadcast %167 : vector<1x128xf32> to vector<16x128xf32>
    %184 = arith.subf %155, %183 : vector<16x128xf32>
    %185 = vector.broadcast %181 : vector<1x128xf32> to vector<16x128xf32>
    %186 = arith.mulf %184, %185 : vector<16x128xf32>
    %187 = vector.broadcast %182 : vector<16x1xf32> to vector<16x128xf32>
    %188 = arith.mulf %187, %186 : vector<16x128xf32>
    %189 = vector.extract_strided_slice %106 {offsets = [0, 2], sizes = [16, 1], strides = [1, 1]} : vector<16x3xf32> to vector<16x1xf32>
    %190 = vector.broadcast %189 : vector<16x1xf32> to vector<16x128xf32>
    %191 = arith.addf %188, %190 : vector<16x128xf32>
    %192 = vector.extract_strided_slice %108 {offsets = [0, 1], sizes = [16, 1], strides = [1, 1]} : vector<16x3xf32> to vector<16x1xf32>
    %193 = vector.broadcast %167 : vector<1x128xf32> to vector<16x128xf32>
    %194 = arith.subf %160, %193 : vector<16x128xf32>
    %195 = vector.broadcast %181 : vector<1x128xf32> to vector<16x128xf32>
    %196 = arith.mulf %194, %195 : vector<16x128xf32>
    %197 = vector.broadcast %192 : vector<16x1xf32> to vector<16x128xf32>
    %198 = arith.mulf %197, %196 : vector<16x128xf32>
    %199 = vector.extract_strided_slice %108 {offsets = [0, 2], sizes = [16, 1], strides = [1, 1]} : vector<16x3xf32> to vector<16x1xf32>
    %200 = vector.broadcast %199 : vector<16x1xf32> to vector<16x128xf32>
    %201 = arith.addf %198, %200 : vector<16x128xf32>
    %c0_73 = arith.constant 0 : index
    %c0_74 = arith.constant 0 : index
    %c0_75 = arith.constant 0 : index
    %202 = vector.load %arg8[%c0_73, %c0_74, %c0_75] : memref<2x48x16xf32, #tpu.memory_space<vmem>>, vector<1x48x16xf32>
    %203 = vector.shape_cast %202 : vector<1x48x16xf32> to vector<48x16xf32>
    %cst_76 = arith.constant dense<0.000000e+00> : vector<48x128xf32>
    %204 = tpu.matmul %203, %191, %cst_76 {dimension_numbers = #tpu.dot_dimension_numbers<[1], [0], [0], [1], [0, 0, 1, 1], [], []>} : vector<48x16xf32>, vector<16x128xf32>, vector<48x128xf32> -> vector<48x128xf32>
    %c1_77 = arith.constant 1 : index
    %c0_78 = arith.constant 0 : index
    %c0_79 = arith.constant 0 : index
    %205 = vector.load %arg8[%c1_77, %c0_78, %c0_79] : memref<2x48x16xf32, #tpu.memory_space<vmem>>, vector<1x48x16xf32>
    %206 = vector.shape_cast %205 : vector<1x48x16xf32> to vector<48x16xf32>
    %cst_80 = arith.constant dense<0.000000e+00> : vector<48x128xf32>
    %207 = tpu.matmul %206, %201, %cst_80 {dimension_numbers = #tpu.dot_dimension_numbers<[1], [0], [0], [1], [0, 0, 1, 1], [], []>} : vector<48x16xf32>, vector<16x128xf32>, vector<48x128xf32> -> vector<48x128xf32>
    %208 = arith.addf %204, %207 : vector<48x128xf32>
    %c0_81 = arith.constant 0 : index
    %c0_82 = arith.constant 0 : index
    %209 = vector.load %arg9[%c0_81, %c0_82] : memref<48x1xf32, #tpu.memory_space<vmem>>, vector<48x1xf32>
    %210 = vector.broadcast %209 : vector<48x1xf32> to vector<48x128xf32>
    %211 = arith.addf %208, %210 : vector<48x128xf32>
    %212 = vector.extract_strided_slice %211 {offsets = [0, 0], sizes = [16, 128], strides = [1, 1]} : vector<48x128xf32> to vector<16x128xf32>
    %213 = arith.addf %1, %212 : vector<16x128xf32>
    %c0_83 = arith.constant 0 : index
    %c0_84 = arith.constant 0 : index
    %c0_85 = arith.constant 0 : index
    %214 = vector.load %arg12[%c0_83, %c0_84, %c0_85] : memref<1x16x128xf32, #tpu.memory_space<vmem>>, vector<1x16x128xf32>
    %215 = vector.shape_cast %214 : vector<1x16x128xf32> to vector<16x128xf32>
    %216 = vector.shape_cast %213 : vector<16x128xf32> to vector<1x16x128xf32>
    tpu.vector_store %arg12[%c0_83, %c0_84, %c0_85], %216 {strides = array<i32>} : memref<1x16x128xf32, #tpu.memory_space<vmem>>, vector<1x16x128xf32>,
    %217 = vector.extract_strided_slice %211 {offsets = [16, 0], sizes = [32, 128], strides = [1, 1]} : vector<48x128xf32> to vector<32x128xf32>
    %c0_86 = arith.constant 0 : index
    %c0_87 = arith.constant 0 : index
    %c0_88 = arith.constant 0 : index
    %218 = vector.load %arg11[%c0_86, %c0_87, %c0_88] : memref<1x32x128xf32, #tpu.memory_space<vmem>>, vector<1x32x128xf32>
    %219 = vector.shape_cast %218 : vector<1x32x128xf32> to vector<32x128xf32>
    %220 = vector.shape_cast %217 : vector<32x128xf32> to vector<1x32x128xf32>
    tpu.vector_store %arg11[%c0_86, %c0_87, %c0_88], %220 {strides = array<i32>} : memref<1x32x128xf32, #tpu.memory_space<vmem>>, vector<1x32x128xf32>,
    return
  }
  func.func @transform_0(%arg0: i32, %arg1: i32) -> (i32, i32, i32) {
    %c0_i32 = arith.constant 0 : i32
    %c0_i32_0 = arith.constant 0 : i32
    return %arg0, %c0_i32, %arg1 : i32, i32, i32
  }
  func.func @transform_1(%arg0: i32, %arg1: i32) -> (i32, i32, i32, i32) {
    %c0_i32 = arith.constant 0 : i32
    %c0_i32_0 = arith.constant 0 : i32
    %c0_i32_1 = arith.constant 0 : i32
    return %arg0, %arg1, %c0_i32, %c0_i32_0 : i32, i32, i32, i32
  }
  func.func @transform_2(%arg0: i32, %arg1: i32) -> (i32, i32) {
    %c0_i32 = arith.constant 0 : i32
    %c0_i32_0 = arith.constant 0 : i32
    %c0_i32_1 = arith.constant 0 : i32
    return %c0_i32, %c0_i32_0 : i32, i32
  }
  func.func @transform_3(%arg0: i32, %arg1: i32) -> (i32, i32) {
    %c0_i32 = arith.constant 0 : i32
    %c0_i32_0 = arith.constant 0 : i32
    %c0_i32_1 = arith.constant 0 : i32
    return %c0_i32, %c0_i32_0 : i32, i32
  }
  func.func @transform_4(%arg0: i32, %arg1: i32) -> (i32, i32, i32) {
    %c0_i32 = arith.constant 0 : i32
    %c0_i32_0 = arith.constant 0 : i32
    %c0_i32_1 = arith.constant 0 : i32
    %c0_i32_2 = arith.constant 0 : i32
    return %c0_i32, %c0_i32_0, %c0_i32_1 : i32, i32, i32
  }
  func.func @transform_5(%arg0: i32, %arg1: i32) -> (i32, i32, i32) {
    %c0_i32 = arith.constant 0 : i32
    %c0_i32_0 = arith.constant 0 : i32
    %c0_i32_1 = arith.constant 0 : i32
    %c0_i32_2 = arith.constant 0 : i32
    return %c0_i32, %c0_i32_0, %c0_i32_1 : i32, i32, i32
  }
  func.func @transform_6(%arg0: i32, %arg1: i32) -> (i32, i32, i32) {
    %c0_i32 = arith.constant 0 : i32
    %c0_i32_0 = arith.constant 0 : i32
    %c0_i32_1 = arith.constant 0 : i32
    %c0_i32_2 = arith.constant 0 : i32
    return %c0_i32, %c0_i32_0, %c0_i32_1 : i32, i32, i32
  }
  func.func @transform_7(%arg0: i32, %arg1: i32) -> (i32, i32) {
    %c0_i32 = arith.constant 0 : i32
    %c0_i32_0 = arith.constant 0 : i32
    %c0_i32_1 = arith.constant 0 : i32
    return %c0_i32, %c0_i32_0 : i32, i32
  }
  func.func @transform_8(%arg0: i32, %arg1: i32) -> (i32, i32) {
    %c0_i32 = arith.constant 0 : i32
    %c0_i32_0 = arith.constant 0 : i32
    %c0_i32_1 = arith.constant 0 : i32
    return %c0_i32, %c0_i32_0 : i32, i32
  }
  func.func @transform_9(%arg0: i32, %arg1: i32) -> (i32, i32, i32) {
    %c0_i32 = arith.constant 0 : i32
    %c0_i32_0 = arith.constant 0 : i32
    return %arg0, %c0_i32, %arg1 : i32, i32, i32
  }
  func.func @transform_10(%arg0: i32, %arg1: i32) -> (i32, i32, i32) {
    %c0_i32 = arith.constant 0 : i32
    %c0_i32_0 = arith.constant 0 : i32
    return %arg0, %c0_i32, %arg1 : i32, i32, i32
  }
}

</mosaic_0001>

<llo_original>
// kernel: tpu_custom_call.1
$region0: #{tpu_custom_call.1}
  #allocation0 [shape = 'u32[]', space=smem, size = 0x4, offset = 0x4, fixed_abs, tag = 'smem constant byte address 0x4 - core index']
  #allocation1 [shape = 'u32[144,128]{1,0:T(1,128)}', space=vmem, size = 0x12000, scoped, tag = 'internal scratch']
  %s0 = inlined_call_operand.vmem [shape: f32[2,16,256], index: 0, kind: input, shape index: {}]
  %s1 = inlined_call_operand.vmem [shape: f32[2,2,16,2], index: 1, kind: input, shape index: {}]
  %s2 = inlined_call_operand.vmem [shape: f32[32,16], index: 2, kind: input, shape index: {}]
  %s3 = inlined_call_operand.vmem [shape: f32[32,3], index: 3, kind: input, shape index: {}]
  %s4 = inlined_call_operand.vmem [shape: f32[6,16,32], index: 4, kind: input, shape index: {}]
  %s5 = inlined_call_operand.vmem [shape: f32[2,16,3], index: 5, kind: input, shape index: {}]
  %s6 = inlined_call_operand.vmem [shape: f32[2,48,16], index: 6, kind: input, shape index: {}]
  %s7 = inlined_call_operand.vmem [shape: f32[48,1], index: 7, kind: input, shape index: {}]
  %s8 = inlined_call_operand.vmem [shape: f32[1,2], index: 8, kind: input, shape index: {}]
  %s9 = inlined_call_operand.hbm [shape: f32[2,32,256], index: 9, kind: output, shape index: {0}]
  %s10 = inlined_call_operand.hbm [shape: f32[2,16,256], index: 10, kind: output, shape index: {1}]
  %11 = xla_tuple %s9, %s10
  %s12 = sld [smem:[#allocation0]]
  $region115: #{tpu_custom_call.1} parent=0
    _
  %s14 = ssub.s32 1, %s12
  %s15 = scalar_select 0, %s14, %s12
  $region1: #{tpu_custom_call.1} parent=0
    #allocation2 [shape = 'u8[16384]{0}', space=vmem, size = 0x4000, scoped, tag = 'input window, operand 0']
    #allocation3 [shape = 'u8[32768]{0}', space=vmem, size = 0x8000, scoped, tag = 'output window, operand 0']
    #allocation4 [shape = 's32[2]{0}', space=sflag, size = 0x8, scoped, tag = 'scoped memory for tpu_custom_call.1']
    #allocation5 [shape = 'u8[16384]{0}', space=vmem, size = 0x4000, scoped, tag = 'output window, operand 1']
    #allocation6 [shape = 's32[2]{0}', space=sflag, size = 0x8, scoped, tag = 'scoped memory for tpu_custom_call.1']
    %16 = vsyncpa [#allocation4], 0
    %s17 = scalar_lea.sflag [#allocation4], 1
    %18 = vsyncpa %s17, 0
    %19 = vsyncpa [#allocation6], 0
    %s20 = scalar_lea.sflag [#allocation6], 1
    %21 = vsyncpa %s20, 0
    loop: start=0, step=1, limit=6
    $region2: #{tpu_custom_call.1} parent=1 // loop_pre_header
      _
    $region3: #{tpu_custom_call.1} parent=1 // loop_header
      %s23 = sphi 0, %s27
      %p24 = scmp.ge.s32.totalorder %s23, 6
      %s30 = sphi 0, %s42
      %s31 = sphi 0, %s38
      %s32 = sphi 0, %s30
      %s33 = sphi 0, %s31
      %s34 = sphi 0, %s32
      %s35 = sphi 0, %s33
      %s47 = sphi 0, %s49
      %s50 = sphi 0, %s47
      %s51 = sphi 0, %s50
      %s67 = sphi 0, %s51
      %s75 = sphi 0, %s77
      %s78 = sphi 0, %s75
      %s79 = sphi 0, %s78
      %s95 = sphi 0, %s79
      %s99 = sphi 0, %s99
      %s101 = sphi 0, %s99
      %s102 = sphi 0, %s101
      %s116 = sphi 0, %s102
      %s120 = sphi 0, %s120
      %s122 = sphi 0, %s120
      %s123 = sphi 0, %s122
      %s137 = sphi 0, %s123
      %s141 = sphi 0, %s141
      %s143 = sphi 0, %s141
      %s144 = sphi 0, %s143
      %s158 = sphi 0, %s144
      %s162 = sphi 0, %s162
      %s164 = sphi 0, %s162
      %s165 = sphi 0, %s164
      %s179 = sphi 0, %s165
      %s183 = sphi 0, %s183
      %s185 = sphi 0, %s183
      %s186 = sphi 0, %s185
      %s200 = sphi 0, %s186
      %s204 = sphi 0, %s204
      %s206 = sphi 0, %s204
      %s207 = sphi 0, %s206
      %s221 = sphi 0, %s207
      %s225 = sphi 0, %s225
      %s227 = sphi 0, %s225
      %s228 = sphi 0, %s227
      %s242 = sphi 0, %s228
      %s250 = sphi 0, %s252
      %s253 = sphi 0, %s250
      %s254 = sphi 0, %s253
      %s270 = sphi 0, %s254
      %s278 = sphi 0, %s280
      %s281 = sphi 0, %s278
      %s282 = sphi 0, %s281
      %s298 = sphi 0, %s282
    $region4: #{tpu_custom_call.1} parent=1 // loop_header_branch
      %26 = sbr.rel (%p24) target = $region8
    $region5: #{tpu_custom_call.1} parent=1 // loop_body
      %s28 = ssub.s32 %s23, 1
      %s29 = ssub.s32 %s23, 2
      %s36 = sadd.s32 1, %s31
      %p37 = scmp.ge.s32.totalorder %s36, 2
      %s38 = scalar_select %p37, 0, %s36
      %s39 = sadd.s32 1, %s30
      %s40 = scalar_select %p37, %s39, %s30
      %p41 = scmp.ge.s32.totalorder %s40, 2
      %s42 = scalar_select %p41, 0, %s40
      %s43 = ssub.s32 %s30, %s42
      %s44 = ssub.s32 %s31, %s38
      %s45 = sor.u32 %s43, %s44
      %p46 = scmp.eq.s32.totalorder %s45, 0
      %s48 = sadd.s32 %s47, 1
      %s49 = scalar_select %p46, %s47, %s48
      %p52 = pneg %p46
      %p53 = scmp.eq.s32.totalorder %s23, 3
      %p54 = por %p52, %p53
      %p55 = scmp.ne.s32.totalorder %s47, %s50
      %p56 = scmp.eq.s32.totalorder %s23, 0
      %p57 = por %p55, %p56
      %p58 = scmp.ne.s32.totalorder %s47, %s50
      %p59 = scmp.eq.s32.totalorder %s28, 3
      %p60 = por %p58, %p59
      %p61 = scmp.ne.s32.totalorder %s50, %s51
      %p62 = scmp.eq.s32.totalorder %s28, 0
      %p63 = por %p61, %p62
      %p64 = scmp.ne.s32.totalorder %s50, %s51
      %p65 = scmp.eq.s32.totalorder %s29, 3
      %p66 = por %p64, %p65
      %p68 = scmp.ne.s32.totalorder %s51, %s67
      %p69 = scmp.eq.s32.totalorder %s29, 0
      %p70 = por %p68, %p69
      %s71 = ssub.s32 %s30, %s42
      %s72 = ssub.s32 %s31, %s38
      %s73 = sor.u32 %s71, %s72
      %p74 = scmp.eq.s32.totalorder %s73, 0
      %s76 = sadd.s32 %s75, 1
      %s77 = scalar_select %p74, %s75, %s76
      %p80 = pneg %p74
      %p81 = scmp.eq.s32.totalorder %s23, 3
      %p82 = por %p80, %p81
      %p83 = scmp.ne.s32.totalorder %s75, %s78
      %p84 = scmp.eq.s32.totalorder %s23, 0
      %p85 = por %p83, %p84
      %p86 = scmp.ne.s32.totalorder %s75, %s78
      %p87 = scmp.eq.s32.totalorder %s28, 3
      %p88 = por %p86, %p87
      %p89 = scmp.ne.s32.totalorder %s78, %s79
      %p90 = scmp.eq.s32.totalorder %s28, 0
      %p91 = por %p89, %p90
      %p92 = scmp.ne.s32.totalorder %s78, %s79
      %p93 = scmp.eq.s32.totalorder %s29, 3
      %p94 = por %p92, %p93
      %p96 = scmp.ne.s32.totalorder %s79, %s95
      %p97 = scmp.eq.s32.totalorder %s29, 0
      %p98 = por %p96, %p97
      %s100 = sadd.s32 %s99, 1
      %p103 = scmp.eq.s32.totalorder %s23, 3
      %p104 = scmp.ne.s32.totalorder %s99, %s101
      %p105 = scmp.eq.s32.totalorder %s23, 0
      %p106 = por %p104, %p105
      %p107 = scmp.ne.s32.totalorder %s99, %s101
      %p108 = scmp.eq.s32.totalorder %s28, 3
      %p109 = por %p107, %p108
      %p110 = scmp.ne.s32.totalorder %s101, %s102
      %p111 = scmp.eq.s32.totalorder %s28, 0
      %p112 = por %p110, %p111
      %p113 = scmp.ne.s32.totalorder %s101, %s102
      %p114 = scmp.eq.s32.totalorder %s29, 3
      %p115 = por %p113, %p114
      %p117 = scmp.ne.s32.totalorder %s102, %s116
      %p118 = scmp.eq.s32.totalorder %s29, 0
      %p119 = por %p117, %p118
      %s121 = sadd.s32 %s120, 1
      %p124 = scmp.eq.s32.totalorder %s23, 3
      %p125 = scmp.ne.s32.totalorder %s120, %s122
      %p126 = scmp.eq.s32.totalorder %s23, 0
      %p127 = por %p125, %p126
      %p128 = scmp.ne.s32.totalorder %s120, %s122
      %p129 = scmp.eq.s32.totalorder %s28, 3
      %p130 = por %p128, %p129
      %p131 = scmp.ne.s32.totalorder %s122, %s123
      %p132 = scmp.eq.s32.totalorder %s28, 0
      %p133 = por %p131, %p132
      %p134 = scmp.ne.s32.totalorder %s122, %s123
      %p135 = scmp.eq.s32.totalorder %s29, 3
      %p136 = por %p134, %p135
      %p138 = scmp.ne.s32.totalorder %s123, %s137
      %p139 = scmp.eq.s32.totalorder %s29, 0
      %p140 = por %p138, %p139
      %s142 = sadd.s32 %s141, 1
      %p145 = scmp.eq.s32.totalorder %s23, 3
      %p146 = scmp.ne.s32.totalorder %s141, %s143
      %p147 = scmp.eq.s32.totalorder %s23, 0
      %p148 = por %p146, %p147
      %p149 = scmp.ne.s32.totalorder %s141, %s143
      %p150 = scmp.eq.s32.totalorder %s28, 3
      %p151 = por %p149, %p150
      %p152 = scmp.ne.s32.totalorder %s143, %s144
      %p153 = scmp.eq.s32.totalorder %s28, 0
      %p154 = por %p152, %p153
      %p155 = scmp.ne.s32.totalorder %s143, %s144
      %p156 = scmp.eq.s32.totalorder %s29, 3
      %p157 = por %p155, %p156
      %p159 = scmp.ne.s32.totalorder %s144, %s158
      %p160 = scmp.eq.s32.totalorder %s29, 0
      %p161 = por %p159, %p160
      %s163 = sadd.s32 %s162, 1
      %p166 = scmp.eq.s32.totalorder %s23, 3
      %p167 = scmp.ne.s32.totalorder %s162, %s164
      %p168 = scmp.eq.s32.totalorder %s23, 0
      %p169 = por %p167, %p168
      %p170 = scmp.ne.s32.totalorder %s162, %s164
      %p171 = scmp.eq.s32.totalorder %s28, 3
      %p172 = por %p170, %p171
      %p173 = scmp.ne.s32.totalorder %s164, %s165
      %p174 = scmp.eq.s32.totalorder %s28, 0
      %p175 = por %p173, %p174
      %p176 = scmp.ne.s32.totalorder %s164, %s165
      %p177 = scmp.eq.s32.totalorder %s29, 3
      %p178 = por %p176, %p177
      %p180 = scmp.ne.s32.totalorder %s165, %s179
      %p181 = scmp.eq.s32.totalorder %s29, 0
      %p182 = por %p180, %p181
      %s184 = sadd.s32 %s183, 1
      %p187 = scmp.eq.s32.totalorder %s23, 3
      %p188 = scmp.ne.s32.totalorder %s183, %s185
      %p189 = scmp.eq.s32.totalorder %s23, 0
      %p190 = por %p188, %p189
      %p191 = scmp.ne.s32.totalorder %s183, %s185
      %p192 = scmp.eq.s32.totalorder %s28, 3
      %p193 = por %p191, %p192
      %p194 = scmp.ne.s32.totalorder %s185, %s186
      %p195 = scmp.eq.s32.totalorder %s28, 0
      %p196 = por %p194, %p195
      %p197 = scmp.ne.s32.totalorder %s185, %s186
      %p198 = scmp.eq.s32.totalorder %s29, 3
      %p199 = por %p197, %p198
      %p201 = scmp.ne.s32.totalorder %s186, %s200
      %p202 = scmp.eq.s32.totalorder %s29, 0
      %p203 = por %p201, %p202
      %s205 = sadd.s32 %s204, 1
      %p208 = scmp.eq.s32.totalorder %s23, 3
      %p209 = scmp.ne.s32.totalorder %s204, %s206
      %p210 = scmp.eq.s32.totalorder %s23, 0
      %p211 = por %p209, %p210
      %p212 = scmp.ne.s32.totalorder %s204, %s206
      %p213 = scmp.eq.s32.totalorder %s28, 3
      %p214 = por %p212, %p213
      %p215 = scmp.ne.s32.totalorder %s206, %s207
      %p216 = scmp.eq.s32.totalorder %s28, 0
      %p217 = por %p215, %p216
      %p218 = scmp.ne.s32.totalorder %s206, %s207
      %p219 = scmp.eq.s32.totalorder %s29, 3
      %p220 = por %p218, %p219
      %p222 = scmp.ne.s32.totalorder %s207, %s221
      %p223 = scmp.eq.s32.totalorder %s29, 0
      %p224 = por %p222, %p223
      %s226 = sadd.s32 %s225, 1
      %p229 = scmp.eq.s32.totalorder %s23, 3
      %p230 = scmp.ne.s32.totalorder %s225, %s227
      %p231 = scmp.eq.s32.totalorder %s23, 0
      %p232 = por %p230, %p231
      %p233 = scmp.ne.s32.totalorder %s225, %s227
      %p234 = scmp.eq.s32.totalorder %s28, 3
      %p235 = por %p233, %p234
      %p236 = scmp.ne.s32.totalorder %s227, %s228
      %p237 = scmp.eq.s32.totalorder %s28, 0
      %p238 = por %p236, %p237
      %p239 = scmp.ne.s32.totalorder %s227, %s228
      %p240 = scmp.eq.s32.totalorder %s29, 3
      %p241 = por %p239, %p240
      %p243 = scmp.ne.s32.totalorder %s228, %s242
      %p244 = scmp.eq.s32.totalorder %s29, 0
      %p245 = por %p243, %p244
      %s246 = ssub.s32 %s30, %s42
      %s247 = ssub.s32 %s31, %s38
      %s248 = sor.u32 %s246, %s247
      %p249 = scmp.eq.s32.totalorder %s248, 0
      %s251 = sadd.s32 %s250, 1
      %s252 = scalar_select %p249, %s250, %s251
      %p255 = pneg %p249
      %p256 = scmp.eq.s32.totalorder %s23, 3
      %p257 = por %p255, %p256
      %p258 = scmp.ne.s32.totalorder %s250, %s253
      %p259 = scmp.eq.s32.totalorder %s23, 0
      %p260 = por %p258, %p259
      %p261 = scmp.ne.s32.totalorder %s250, %s253
      %p262 = scmp.eq.s32.totalorder %s28, 3
      %p263 = por %p261, %p262
      %p264 = scmp.ne.s32.totalorder %s253, %s254
      %p265 = scmp.eq.s32.totalorder %s28, 0
      %p266 = por %p264, %p265
      %p267 = scmp.ne.s32.totalorder %s253, %s254
      %p268 = scmp.eq.s32.totalorder %s29, 3
      %p269 = por %p267, %p268
      %p271 = scmp.ne.s32.totalorder %s254, %s270
      %p272 = scmp.eq.s32.totalorder %s29, 0
      %p273 = por %p271, %p272
      %s274 = ssub.s32 %s30, %s42
      %s275 = ssub.s32 %s31, %s38
      %s276 = sor.u32 %s274, %s275
      %p277 = scmp.eq.s32.totalorder %s276, 0
      %s279 = sadd.s32 %s278, 1
      %s280 = scalar_select %p277, %s278, %s279
      %p283 = pneg %p277
      %p284 = scmp.eq.s32.totalorder %s23, 3
      %p285 = por %p283, %p284
      %p286 = scmp.ne.s32.totalorder %s278, %s281
      %p287 = scmp.eq.s32.totalorder %s23, 0
      %p288 = por %p286, %p287
      %p289 = scmp.ne.s32.totalorder %s278, %s281
      %p290 = scmp.eq.s32.totalorder %s28, 3
      %p291 = por %p289, %p290
      %p292 = scmp.ne.s32.totalorder %s281, %s282
      %p293 = scmp.eq.s32.totalorder %s28, 0
      %p294 = por %p292, %p293
      %p295 = scmp.ne.s32.totalorder %s281, %s282
      %p296 = scmp.eq.s32.totalorder %s29, 3
      %p297 = por %p295, %p296
      %p299 = scmp.ne.s32.totalorder %s282, %s298
      %p300 = scmp.eq.s32.totalorder %s29, 0
      %p301 = por %p299, %p300
      %p302 = scmp.le.s32.totalorder 1, %s23
      %p303 = scmp.lt.s32.totalorder %s23, 5
      %p304 = pnand %p302, %p303
      %p305 = pneg %p304
      // Predicated region
      $region9: #{tpu_custom_call.1} parent=5 // pred_check
        _
      $region10: #{tpu_custom_call.1} parent=5 // pred_check_branch
        %307 = sbr.rel (%p304) target = $region12
      $region11: #{tpu_custom_call.1} parent=5 // pred_region
        %s308 = ssub.s32 %s23, 1
        // Predicated region
        $region13: #{tpu_custom_call.1} parent=11 // pred_check
          %p309 = pneg %p112
        $region14: #{tpu_custom_call.1} parent=11 // pred_check_branch
          %311 = sbr.rel (%p309) target = $region16
        $region15: #{tpu_custom_call.1} parent=11 // pred_region
          _
        $region16: #{tpu_custom_call.1} parent=11 // pred_fallthru
          _
        // Predicated region
        $region17: #{tpu_custom_call.1} parent=11 // pred_check
          %p312 = pneg %p133
        $region18: #{tpu_custom_call.1} parent=11 // pred_check_branch
          %314 = sbr.rel (%p312) target = $region20
        $region19: #{tpu_custom_call.1} parent=11 // pred_region
          _
        $region20: #{tpu_custom_call.1} parent=11 // pred_fallthru
          _
        // Predicated region
        $region21: #{tpu_custom_call.1} parent=11 // pred_check
          %p315 = pneg %p154
        $region22: #{tpu_custom_call.1} parent=11 // pred_check_branch
          %317 = sbr.rel (%p315) target = $region24
        $region23: #{tpu_custom_call.1} parent=11 // pred_region
          _
        $region24: #{tpu_custom_call.1} parent=11 // pred_fallthru
          _
        // Predicated region
        $region25: #{tpu_custom_call.1} parent=11 // pred_check
          %p318 = pneg %p175
        $region26: #{tpu_custom_call.1} parent=11 // pred_check_branch
          %320 = sbr.rel (%p318) target = $region28
        $region27: #{tpu_custom_call.1} parent=11 // pred_region
          _
        $region28: #{tpu_custom_call.1} parent=11 // pred_fallthru
          _
        // Predicated region
        $region29: #{tpu_custom_call.1} parent=11 // pred_check
          %p321 = pneg %p196
        $region30: #{tpu_custom_call.1} parent=11 // pred_check_branch
          %323 = sbr.rel (%p321) target = $region32
        $region31: #{tpu_custom_call.1} parent=11 // pred_region
          _
        $region32: #{tpu_custom_call.1} parent=11 // pred_fallthru
          _
        // Predicated region
        $region33: #{tpu_custom_call.1} parent=11 // pred_check
          %p324 = pneg %p217
        $region34: #{tpu_custom_call.1} parent=11 // pred_check_branch
          %326 = sbr.rel (%p324) target = $region36
        $region35: #{tpu_custom_call.1} parent=11 // pred_region
          _
        $region36: #{tpu_custom_call.1} parent=11 // pred_fallthru
          _
        // Predicated region
        $region37: #{tpu_custom_call.1} parent=11 // pred_check
          %p327 = pneg %p238
        $region38: #{tpu_custom_call.1} parent=11 // pred_check_branch
          %329 = sbr.rel (%p327) target = $region40
        $region39: #{tpu_custom_call.1} parent=11 // pred_region
          _
        $region40: #{tpu_custom_call.1} parent=11 // pred_fallthru
          _
      $region12: #{tpu_custom_call.1} parent=5 // pred_fallthru
        _
      %p330 = scmp.lt.s32.totalorder %s23, 4
      // Predicated region
      $region41: #{tpu_custom_call.1} parent=5 // pred_check
        %p331 = pneg %p330
      $region42: #{tpu_custom_call.1} parent=5 // pred_check_branch
        %333 = sbr.rel (%p331) target = $region44
      $region43: #{tpu_custom_call.1} parent=5 // pred_region
        // Predicated region
        $region45: #{tpu_custom_call.1} parent=43 // pred_check
          %p334 = pneg %p57
        $region46: #{tpu_custom_call.1} parent=43 // pred_check_branch
          %336 = sbr.rel (%p334) target = $region48
        $region47: #{tpu_custom_call.1} parent=43 // pred_region
          %s337 = sand.u32 %s47, 1
          %s338 = sand.u32 %s47, 1
          %s339 = smul.addr %s338, 16
          %s340 = scalar_lea.vmem [#allocation2], %s339
          %s341 = smul.addr %s30, 4
          %s342 = sadd.s32 %s31, %s341
          %s343 = smul.addr %s342, 8
          %s344 = scalar_lea.vmem %s0, %s343
          // Predicated region
          $region49: #{tpu_custom_call.1} parent=47 // pred_check
            _
          $region50: #{tpu_custom_call.1} parent=47 // pred_check_branch
            %346 = sbr.rel (0) target = $region52
          $region51: #{tpu_custom_call.1} parent=47 // pred_region
            // Predicated region
            $region53: #{tpu_custom_call.1} parent=51 // pred_check
              _
            $region54: #{tpu_custom_call.1} parent=51 // pred_check_branch
              %348 = sbr.rel (0) target = $region56
            $region55: #{tpu_custom_call.1} parent=51 // pred_region
              // Predicated region
              $region68: #{tpu_custom_call.1} parent=55 // pred_check
                _
              $region69: #{tpu_custom_call.1} parent=55 // pred_check_branch
                %365 = sbr.rel (0) target = $region71
              $region70: #{tpu_custom_call.1} parent=55 // pred_region
                loop: start=0, step=1, limit=1
                $region72: #{tpu_custom_call.1} parent=70 // loop_pre_header
                  _
                $region73: #{tpu_custom_call.1} parent=70 // loop_header
                  %s367 = sphi 0, %s371
                  %p368 = scmp.ge.s32.totalorder %s367, 1
                  %s372 = sphi %s344, %s344
                  %s373 = sphi %s340, %s340
                $region74: #{tpu_custom_call.1} parent=70 // loop_header_branch
                  %370 = sbr.rel (%p368) target = $region78
                $region75: #{tpu_custom_call.1} parent=70 // loop_body
                  %v374 = vld [vmem:[%s372] sm:$0xff]
                  %375 = vst [vmem:[%s373] sm:$0xff] %v374
                  %v376 = vld [vmem:[%s372 + $0x10] sm:$0xff]
                  %377 = vst [vmem:[%s373 + $0x8] sm:$0xff] %v376
                $region76: #{tpu_custom_call.1} parent=70 // loop_footer
                  %s371 = sadd.s32 1, %s367
                $region77: #{tpu_custom_call.1} parent=70 // loop_footer_branch
                  %366 = sbr.rel target = $region73
                $region78: #{tpu_custom_call.1} parent=70 // loop_exit
                  _
              $region71: #{tpu_custom_call.1} parent=55 // pred_fallthru
                _
              // Predicated region
              $region79: #{tpu_custom_call.1} parent=55 // pred_check
                _
              $region80: #{tpu_custom_call.1} parent=55 // pred_check_branch
                %379 = sbr.rel target = $region82
              $region81: #{tpu_custom_call.1} parent=55 // pred_region
                _
              $region82: #{tpu_custom_call.1} parent=55 // pred_fallthru
                _
            $region56: #{tpu_custom_call.1} parent=51 // pred_fallthru
              _
            // Predicated region
            $region57: #{tpu_custom_call.1} parent=51 // pred_check
              _
            $region58: #{tpu_custom_call.1} parent=51 // pred_check_branch
              %350 = sbr.rel target = $region60
            $region59: #{tpu_custom_call.1} parent=51 // pred_region
              loop: start=0, step=1, limit=1
              $region61: #{tpu_custom_call.1} parent=59 // loop_pre_header
                _
              $region62: #{tpu_custom_call.1} parent=59 // loop_header
                %s353 = sphi 0, %s357
                %p354 = scmp.ge.s32.totalorder %s353, 1
                %s358 = sphi %s344, %s344
                %s359 = sphi %s340, %s340
              $region63: #{tpu_custom_call.1} parent=59 // loop_header_branch
                %356 = sbr.rel (%p354) target = $region67
              $region64: #{tpu_custom_call.1} parent=59 // loop_body
                %v360 = vld [vmem:[%s358] sm:$0xff]
                %361 = vst [vmem:[%s359] sm:$0xff] %v360
                %v362 = vld [vmem:[%s358 + $0x10] sm:$0xff]
                %363 = vst [vmem:[%s359 + $0x8] sm:$0xff] %v362
              $region65: #{tpu_custom_call.1} parent=59 // loop_footer
                %s357 = sadd.s32 1, %s353
              $region66: #{tpu_custom_call.1} parent=59 // loop_footer_branch
                %352 = sbr.rel target = $region62
              $region67: #{tpu_custom_call.1} parent=59 // loop_exit
                _
            $region60: #{tpu_custom_call.1} parent=51 // pred_fallthru
              _
          $region52: #{tpu_custom_call.1} parent=47 // pred_fallthru
            _
          %380 = vnop
        $region48: #{tpu_custom_call.1} parent=43 // pred_fallthru
          _
        // Predicated region
        $region83: #{tpu_custom_call.1} parent=43 // pred_check
          %p381 = pneg %p85
        $region84: #{tpu_custom_call.1} parent=43 // pred_check_branch
          %383 = sbr.rel (%p381) target = $region86
        $region85: #{tpu_custom_call.1} parent=43 // pred_region
          %p384 = scmp.lt.s32.totalorder %s30, 1
          %s385 = scalar_select %p384, %s30, 1
          %p386 = scmp.lt.s32.totalorder %s31, 1
          %s387 = scalar_select %p386, %s31, 1
          %s388 = smul.addr %s387, 2
          %s389 = smul.addr %s385, 4
          %s390 = sadd.s32 %s388, %s389
          %s391 = smul.addr %s390, 8
          %s392 = scalar_lea.vmem %s1, %s391
        $region86: #{tpu_custom_call.1} parent=43 // pred_fallthru
          _
      $region44: #{tpu_custom_call.1} parent=5 // pred_fallthru
        _
      %p393 = scmp.le.s32.totalorder 1, %s23
      %p394 = scmp.lt.s32.totalorder %s23, 5
      %p395 = pnand %p393, %p394
      %p396 = pneg %p395
      // Predicated region
      $region87: #{tpu_custom_call.1} parent=5 // pred_check
        _
      $region88: #{tpu_custom_call.1} parent=5 // pred_check_branch
        %398 = sbr.rel (%p395) target = $region90
      $region89: #{tpu_custom_call.1} parent=5 // pred_region
        %s399 = ssub.s32 %s23, 1
        %s400 = sand.u32 %s50, 1
        %s401 = sand.u32 %s50, 1
        %s402 = smul.addr %s401, 16
        %s403 = scalar_lea.vmem [#allocation2], %s402
        // Predicated region
        $region91: #{tpu_custom_call.1} parent=89 // pred_check
          %p404 = pneg %p63
        $region92: #{tpu_custom_call.1} parent=89 // pred_check_branch
          %406 = sbr.rel (%p404) target = $region94
        $region93: #{tpu_custom_call.1} parent=89 // pred_region
          _
        $region94: #{tpu_custom_call.1} parent=89 // pred_fallthru
          _
        %s407 = sand.u32 %s50, 1
        %s408 = sand.u32 %s50, 1
        %s409 = smul.addr %s408, 16
        %s410 = scalar_lea.vmem [#allocation2], %s409
        %p411 = pneg %p63
        %p412 = pneg %p60
        %p413 = scmp.lt.s32.totalorder %s32, 1
        %s414 = scalar_select %p413, %s32, 1
        %p415 = scmp.lt.s32.totalorder %s33, 1
        %s416 = scalar_select %p415, %s33, 1
        %s417 = smul.addr %s416, 2
        %s418 = smul.addr %s414, 4
        %s419 = sadd.s32 %s417, %s418
        %s420 = smul.addr %s419, 8
        %s421 = scalar_lea.vmem %s1, %s420
        %p422 = pneg %p91
        %p423 = pneg %p88
        %p424 = pneg %p112
        %p425 = pneg %p109
        %p426 = pneg %p133
        %p427 = pneg %p130
        %p428 = pneg %p154
        %p429 = pneg %p151
        %p430 = pneg %p175
        %p431 = pneg %p172
        %p432 = pneg %p196
        %p433 = pneg %p193
        %p434 = pneg %p217
        %p435 = pneg %p214
        %p436 = pneg %p238
        %p437 = pneg %p235
        %p438 = pneg %p266
        %p439 = pneg %p263
        %s440 = sand.u32 %s253, 1
        %s441 = scalar_lea.sflag [#allocation4], %s440
        %s442 = sand.u32 %s253, 1
        %s443 = smul.addr %s442, 32
        %s444 = scalar_lea.vmem [#allocation3], %s443
        %p445 = pneg %p294
        %p446 = pneg %p291
        %s447 = sand.u32 %s281, 1
        %s448 = scalar_lea.sflag [#allocation6], %s447
        %s449 = sand.u32 %s281, 1
        %s450 = smul.addr %s449, 16
        %s451 = scalar_lea.vmem [#allocation5], %s450
        %p452 = scmp.lt.s32.totalorder %s32, 1
        %s453 = scalar_select %p452, %s32, 1
        %p454 = scmp.lt.s32.totalorder %s33, 1
        %s455 = scalar_select %p454, %s33, 1
        %s456 = smul.addr %s455, 2
        %s457 = smul.addr %s453, 4
        %s458 = sadd.s32 %s456, %s457
        %s459 = smul.addr %s458, 8
        %s460 = scalar_lea.vmem %s1, %s459
        %v461 = vld [vmem:[%s403] sm:$0xff]
        %v462 = vld [vmem:[%s403 + $0x8] sm:$0xff]
        %v463 = vld [vmem:[%s460] sm:$0xff]
        %v464 = vld [vmem:[%s460 + $0x8] sm:$0xff]
        %v465 = vld [vmem:[%s8] sm:$0x1]
        %v466 = vld [vmem:[%s3] sm:$0xff]
        %v467 = vld [vmem:[%s3 + $0x8] sm:$0xff]
        %v468 = vld [vmem:[%s3 + $0x10] sm:$0xff]
        %v469 = vld [vmem:[%s3 + $0x18] sm:$0xff]
        %v470 = vld [vmem:[%s2] sm:$0xff]
        %v471 = vld [vmem:[%s2 + $0x8] sm:$0xff]
        %v472 = vld [vmem:[%s2 + $0x10] sm:$0xff]
        %v473 = vld [vmem:[%s2 + $0x18] sm:$0xff]
        %475 = vset.pattern.permute.xlu0 0
        %476 = vperm.xlu0 %475, %v466
        %v477 = vpop.permute.xlu0 %476
        %480 = vset.pattern.permute.xlu0 0
        %481 = vperm.xlu0 %480, %v467
        %v482 = vpop.permute.xlu0 %481
        %485 = vset.pattern.permute.xlu0 0
        %486 = vperm.xlu0 %485, %v468
        %v487 = vpop.permute.xlu0 %486
        %490 = vset.pattern.permute.xlu0 0
        %491 = vperm.xlu0 %490, %v469
        %v492 = vpop.permute.xlu0 %491
        %vm494 = vcmask 130048
        %v496 = vsel %vm494, %v470, 0
        %v499 = vsel %vm494, %v471, 0
        %v502 = vsel %vm494, %v472, 0
        %v505 = vsel %vm494, %v473, 0
        %507 = vmatprep.subr.mxu0 0.0
        %508 = vmatpush1.msra.mxu0 %v461
        %509 = vmatprep.subr.mxu0 0.0
        %510 = vmatpush1.msra.mxu0 %v462
        %511 = vmatprep.subr.mxu0 0.0
        %512 = vmatpush1.msra.mxu0 0.0
        %513 = vmatprep.subr.mxu0 0.0
        %514 = vmatpush1.msra.mxu0 0.0
        %515 = vmatprep.subr.mxu0 0.0
        %516 = vmatpush1.msra.mxu0 0.0
        %517 = vmatprep.subr.mxu0 0.0
        %518 = vmatpush1.msra.mxu0 0.0
        %519 = vmatprep.subr.mxu0 0.0
        %520 = vmatpush1.msra.mxu0 0.0
        %521 = vmatprep.subr.mxu0 0.0
        %522 = vmatpush1.msra.mxu0 0.0
        %523 = vmatprep.subr.mxu0 0.0
        %524 = vmatpush1.msra.mxu0 0.0
        %525 = vmatprep.subr.mxu0 0.0
        %526 = vmatpush1.msra.mxu0 0.0
        %527 = vmatprep.subr.mxu0 0.0
        %528 = vmatpush1.msra.mxu0 0.0
        %529 = vmatprep.subr.mxu0 0.0
        %530 = vmatpush1.msra.mxu0 0.0
        %531 = vmatprep.subr.mxu0 0.0
        %532 = vmatpush1.msra.mxu0 0.0
        %533 = vmatprep.subr.mxu0 0.0
        %534 = vmatpush1.msra.mxu0 0.0
        %535 = vmatprep.subr.mxu0 0.0
        %536 = vmatpush1.msra.mxu0 0.0
        %537 = vmatprep.subr.mxu0 0.0
        %538 = vmatpush1.msra.mxu0 0.0
        %539 = vmatprep.subr.mxu0 0.0
        %540 = vmatpush1.msra.mxu0 0.0
        %541 = vmatprep.subr.mxu0 0.0
        %542 = vmatpush1.msra.mxu0 0.0
        %543 = vmatprep.subr.mxu0 0.0
        %544 = vmatpush1.msra.mxu0 0.0
        %545 = vmatprep.subr.mxu0 0.0
        %546 = vmatpush1.msra.mxu0 0.0
        %547 = vmatprep.subr.mxu0 0.0
        %548 = vmatpush1.msra.mxu0 0.0
        %549 = vmatprep.subr.mxu0 0.0
        %550 = vmatpush1.msra.mxu0 0.0
        %551 = vmatprep.subr.mxu0 0.0
        %552 = vmatpush1.msra.mxu0 0.0
        %553 = vmatprep.subr.mxu0 0.0
        %554 = vmatpush1.msra.mxu0 0.0
        %555 = vmatprep.subr.mxu0 0.0
        %556 = vmatpush1.msra.mxu0 0.0
        %557 = vmatprep.subr.mxu0 0.0
        %558 = vmatpush1.msra.mxu0 0.0
        %559 = vmatprep.subr.mxu0 0.0
        %560 = vmatpush1.msra.mxu0 0.0
        %561 = vmatprep.subr.mxu0 0.0
        %562 = vmatpush1.msra.mxu0 0.0
        %563 = vmatprep.subr.mxu0 0.0
        %564 = vmatpush1.msra.mxu0 0.0
        %565 = vmatprep.subr.mxu0 0.0
        %566 = vmatpush1.msra.mxu0 0.0
        %567 = vmatprep.subr.mxu0 0.0
        %568 = vmatpush1.msra.mxu0 0.0
        %569 = vmatprep.subr.mxu0 0.0
        %570 = vmatpush1.msra.mxu0 0.0
        %571 = vmatprep.mubr.f32.mxu0 0.0
        %572 = vmatmul.mubr.f32.gmra.mrb[0].mxu0 %v496
        %v573 = vpop.f32.mrb[0].mxu0
        %v574 = vadd.f32 %v477, %v573
        %v575 = vpop.f32.mrb[0].mxu0
        %576 = vmatprep.mubr.f32.mxu0 0.0
        %577 = vmatmul.mubr.f32.gmra.mrb[0].mxu0 %v499
        %v578 = vpop.f32.mrb[0].mxu0
        %v579 = vadd.f32 %v482, %v578
        %v580 = vpop.f32.mrb[0].mxu0
        %581 = vmatprep.mubr.f32.mxu0 0.0
        %582 = vmatmul.mubr.f32.gmra.mrb[0].mxu0 %v502
        %v583 = vpop.f32.mrb[0].mxu0
        %v584 = vadd.f32 %v487, %v583
        %v585 = vpop.f32.mrb[0].mxu0
        %586 = vmatprep.mubr.f32.mxu0 0.0
        %587 = vmatmul.mubr.f32.gmra.mrb[0].mxu0 %v505
        %v588 = vpop.f32.mrb[0].mxu0
        %v589 = vadd.f32 %v492, %v588
        %v590 = vpop.f32.mrb[0].mxu0
        %591 = vdwg.mxu0
        %vm592 = vcmp.ge.f32.partialorder %v574, 0.0
        %vm593 = vcmp.ge.f32.partialorder %v579, 0.0
        %vm594 = vcmp.ge.f32.partialorder %v584, 0.0
        %vm595 = vcmp.ge.f32.partialorder %v589, 0.0
        %v597 = vlaneseq
        %v598 = vshrl.u32 %v597, 7
        %v599 = vsub.s32 0, %v598
        %v600 = vrot.slane %v465, %v599
        %601 = vset.pattern.permute.xlu0 0
        %602 = vperm.xlu0 %601, %v600
        %v603 = vpop.permute.xlu0 %602
        %v605 = vmul.f32 %v603, %v574
        %v606 = vmul.f32 %v603, %v579
        %v607 = vmul.f32 %v603, %v584
        %v608 = vmul.f32 %v603, %v589
        %v609 = vsel %vm592, %v574, %v605
        %v610 = vsel %vm593, %v579, %v606
        %v611 = vsel %vm594, %v584, %v607
        %v612 = vsel %vm595, %v589, %v608
        %v613 = vadd.f32 %v609, %v610
        %v614 = vadd.f32 %v613, %v611
        %v615 = vadd.f32 %v614, %v612
        %v616 = vrot.slane %v615, 4
        %v617 = vadd.f32 %v615, %v616
        %v618 = vrot.slane %v617, 2
        %v619 = vadd.f32 %v617, %v618
        %v620 = vrot.slane %v619, 1
        %v621 = vadd.f32 %v619, %v620
        %v622 = vmul.f32 %v621, 0.03125
        %v623 = vmul.f32 %v609, %v609
        %v624 = vmul.f32 %v610, %v610
        %v625 = vmul.f32 %v611, %v611
        %v626 = vmul.f32 %v612, %v612
        %v627 = vadd.f32 %v623, %v624
        %v628 = vadd.f32 %v627, %v625
        %v629 = vadd.f32 %v628, %v626
        %v630 = vrot.slane %v629, 4
        %v631 = vadd.f32 %v629, %v630
        %v632 = vrot.slane %v631, 2
        %v633 = vadd.f32 %v631, %v632
        %v634 = vrot.slane %v633, 1
        %v635 = vadd.f32 %v633, %v634
        %v636 = vmul.f32 %v635, 0.03125
        %v637 = vmul.f32 %v622, %v622
        %v638 = vsub.f32 %v636, %v637
        %v639 = vadd.f32 %v638, 1e-05
        %v640 = vrsqrt.pop %v639
        %v641 = vsub.f32 %v609, %v622
        %v642 = vsub.f32 %v610, %v622
        %v643 = vsub.f32 %v611, %v622
        %v644 = vsub.f32 %v612, %v622
        %v645 = vmul.f32 %v641, %v640
        %v646 = vmul.f32 %v642, %v640
        %v647 = vmul.f32 %v643, %v640
        %v648 = vmul.f32 %v644, %v640
        %649 = vset.pattern.permute.xlu0 1
        %650 = vperm.xlu0 %649, %v466
        %v651 = vpop.permute.xlu0 %650
        %653 = vset.pattern.permute.xlu0 1
        %654 = vperm.xlu0 %653, %v467
        %v655 = vpop.permute.xlu0 %654
        %657 = vset.pattern.permute.xlu0 1
        %658 = vperm.xlu0 %657, %v468
        %v659 = vpop.permute.xlu0 %658
        %661 = vset.pattern.permute.xlu0 1
        %662 = vperm.xlu0 %661, %v469
        %v663 = vpop.permute.xlu0 %662
        %v665 = vmul.f32 %v651, %v645
        %v666 = vmul.f32 %v655, %v646
        %v667 = vmul.f32 %v659, %v647
        %v668 = vmul.f32 %v663, %v648
        %669 = vset.pattern.permute.xlu0 2
        %670 = vperm.xlu0 %669, %v466
        %v671 = vpop.permute.xlu0 %670
        %673 = vset.pattern.permute.xlu0 2
        %674 = vperm.xlu0 %673, %v467
        %v675 = vpop.permute.xlu0 %674
        %677 = vset.pattern.permute.xlu0 2
        %678 = vperm.xlu0 %677, %v468
        %v679 = vpop.permute.xlu0 %678
        %681 = vset.pattern.permute.xlu0 2
        %682 = vperm.xlu0 %681, %v469
        %v683 = vpop.permute.xlu0 %682
        %v685 = vadd.f32 %v665, %v671
        %v686 = vadd.f32 %v666, %v675
        %v687 = vadd.f32 %v667, %v679
        %v688 = vadd.f32 %v668, %v683
        %689 = vmatprep.subr.mxu0 0.0
        %690 = vmatpush1.msra.mxu0 %v463
        %691 = vmatprep.subr.mxu0 0.0
        %692 = vmatpush1.msra.mxu0 %v464
        %693 = vmatprep.subr.mxu0 0.0
        %694 = vmatpush1.msra.mxu0 0.0
        %695 = vmatprep.subr.mxu0 0.0
        %696 = vmatpush1.msra.mxu0 0.0
        %697 = vmatprep.subr.mxu0 0.0
        %698 = vmatpush1.msra.mxu0 0.0
        %699 = vmatprep.subr.mxu0 0.0
        %700 = vmatpush1.msra.mxu0 0.0
        %701 = vmatprep.subr.mxu0 0.0
        %702 = vmatpush1.msra.mxu0 0.0
        %703 = vmatprep.subr.mxu0 0.0
        %704 = vmatpush1.msra.mxu0 0.0
        %705 = vmatprep.subr.mxu0 0.0
        %706 = vmatpush1.msra.mxu0 0.0
        %707 = vmatprep.subr.mxu0 0.0
        %708 = vmatpush1.msra.mxu0 0.0
        %709 = vmatprep.subr.mxu0 0.0
        %710 = vmatpush1.msra.mxu0 0.0
        %711 = vmatprep.subr.mxu0 0.0
        %712 = vmatpush1.msra.mxu0 0.0
        %713 = vmatprep.subr.mxu0 0.0
        %714 = vmatpush1.msra.mxu0 0.0
        %715 = vmatprep.subr.mxu0 0.0
        %716 = vmatpush1.msra.mxu0 0.0
        %717 = vmatprep.subr.mxu0 0.0
        %718 = vmatpush1.msra.mxu0 0.0
        %719 = vmatprep.subr.mxu0 0.0
        %720 = vmatpush1.msra.mxu0 0.0
        %721 = vmatprep.subr.mxu0 0.0
        %722 = vmatpush1.msra.mxu0 0.0
        %723 = vmatprep.subr.mxu0 0.0
        %724 = vmatpush1.msra.mxu0 0.0
        %725 = vmatprep.subr.mxu0 0.0
        %726 = vmatpush1.msra.mxu0 0.0
        %727 = vmatprep.subr.mxu0 0.0
        %728 = vmatpush1.msra.mxu0 0.0
        %729 = vmatprep.subr.mxu0 0.0
        %730 = vmatpush1.msra.mxu0 0.0
        %731 = vmatprep.subr.mxu0 0.0
        %732 = vmatpush1.msra.mxu0 0.0
        %733 = vmatprep.subr.mxu0 0.0
        %734 = vmatpush1.msra.mxu0 0.0
        %735 = vmatprep.subr.mxu0 0.0
        %736 = vmatpush1.msra.mxu0 0.0
        %737 = vmatprep.subr.mxu0 0.0
        %738 = vmatpush1.msra.mxu0 0.0
        %739 = vmatprep.subr.mxu0 0.0
        %740 = vmatpush1.msra.mxu0 0.0
        %741 = vmatprep.subr.mxu0 0.0
        %742 = vmatpush1.msra.mxu0 0.0
        %743 = vmatprep.subr.mxu0 0.0
        %744 = vmatpush1.msra.mxu0 0.0
        %745 = vmatprep.subr.mxu0 0.0
        %746 = vmatpush1.msra.mxu0 0.0
        %747 = vmatprep.subr.mxu0 0.0
        %748 = vmatpush1.msra.mxu0 0.0
        %749 = vmatprep.subr.mxu0 0.0
        %750 = vmatpush1.msra.mxu0 0.0
        %751 = vmatprep.subr.mxu0 0.0
        %752 = vmatpush1.msra.mxu0 0.0
        %753 = vmatprep.mubr.f32.mxu0 0.0
        %754 = vmatmul.mubr.f32.gmra.mrb[0].mxu0 %v496
        %v755 = vpop.f32.mrb[0].mxu0
        %v756 = vadd.f32 %v477, %v755
        %v757 = vpop.f32.mrb[0].mxu0
        %758 = vmatprep.mubr.f32.mxu0 0.0
        %759 = vmatmul.mubr.f32.gmra.mrb[0].mxu0 %v499
        %v760 = vpop.f32.mrb[0].mxu0
        %v761 = vadd.f32 %v482, %v760
        %v762 = vpop.f32.mrb[0].mxu0
        %763 = vmatprep.mubr.f32.mxu0 0.0
        %764 = vmatmul.mubr.f32.gmra.mrb[0].mxu0 %v502
        %v765 = vpop.f32.mrb[0].mxu0
        %v766 = vadd.f32 %v487, %v765
        %v767 = vpop.f32.mrb[0].mxu0
        %768 = vmatprep.mubr.f32.mxu0 0.0
        %769 = vmatmul.mubr.f32.gmra.mrb[0].mxu0 %v505
        %v770 = vpop.f32.mrb[0].mxu0
        %v771 = vadd.f32 %v492, %v770
        %v772 = vpop.f32.mrb[0].mxu0
        %773 = vdwg.mxu0
        %vm774 = vcmp.ge.f32.partialorder %v756, 0.0
        %vm775 = vcmp.ge.f32.partialorder %v761, 0.0
        %vm776 = vcmp.ge.f32.partialorder %v766, 0.0
        %vm777 = vcmp.ge.f32.partialorder %v771, 0.0
        %v778 = vmul.f32 %v603, %v756
        %v779 = vmul.f32 %v603, %v761
        %v780 = vmul.f32 %v603, %v766
        %v781 = vmul.f32 %v603, %v771
        %v782 = vsel %vm774, %v756, %v778
        %v783 = vsel %vm775, %v761, %v779
        %v784 = vsel %vm776, %v766, %v780
        %v785 = vsel %vm777, %v771, %v781
        %vm786 = vcmask 15360
        %v787 = vsel %vm786, %v782, 0.0
        %v788 = vsel %vm786, %v783, 0.0
        %v789 = vadd.f32 %v787, %v788
        %v790 = vsel %vm786, %v784, 0.0
        %v791 = vadd.f32 %v789, %v790
        %v792 = vsel %vm786, %v785, 0.0
        %v793 = vadd.f32 %v791, %v792
        %v794 = vrot.slane %v793, 4
        %v795 = vadd.f32 %v793, %v794
        %v796 = vrot.slane %v795, 2
        %v797 = vadd.f32 %v795, %v796
        %v798 = vrot.slane %v797, 1
        %v799 = vadd.f32 %v797, %v798
        %v800 = vmul.f32 %v799, 0.03125
        %v801 = vmul.f32 %v782, %v782
        %v802 = vmul.f32 %v783, %v783
        %v803 = vmul.f32 %v784, %v784
        %v804 = vmul.f32 %v785, %v785
        %v805 = vsel %vm786, %v801, 0.0
        %v806 = vsel %vm786, %v802, 0.0
        %v807 = vadd.f32 %v805, %v806
        %v808 = vsel %vm786, %v803, 0.0
        %v809 = vadd.f32 %v807, %v808
        %v810 = vsel %vm786, %v804, 0.0
        %v811 = vadd.f32 %v809, %v810
        %v812 = vrot.slane %v811, 4
        %v813 = vadd.f32 %v811, %v812
        %v814 = vrot.slane %v813, 2
        %v815 = vadd.f32 %v813, %v814
        %v816 = vrot.slane %v815, 1
        %v817 = vadd.f32 %v815, %v816
        %v818 = vmul.f32 %v817, 0.03125
        %v819 = vmul.f32 %v800, %v800
        %v820 = vsub.f32 %v818, %v819
        %v821 = vadd.f32 %v820, 1e-05
        %v822 = vrsqrt.pop %v821
        %v823 = vsub.f32 %v782, %v800
        %v824 = vsub.f32 %v783, %v800
        %v825 = vsub.f32 %v784, %v800
        %v826 = vsub.f32 %v785, %v800
        %v827 = vmul.f32 %v823, %v822
        %v828 = vmul.f32 %v824, %v822
        %v829 = vmul.f32 %v825, %v822
        %v830 = vmul.f32 %v826, %v822
        %v831 = vmul.f32 %v651, %v827
        %v832 = vmul.f32 %v655, %v828
        %v833 = vmul.f32 %v659, %v829
        %v834 = vmul.f32 %v663, %v830
        %v835 = vadd.f32 %v831, %v671
        %v836 = vadd.f32 %v832, %v675
        %v837 = vadd.f32 %v833, %v679
        %v838 = vadd.f32 %v834, %v683
        %s839 = smul.u32 %s33, 128
        %v840 = vlaneseq
        %v841 = vand.u32 %v840, 127
        %v842 = vstv %s839
        %v843 = vadd.s32 %v842, %v841
        %vm844 = vcmp.gt.s32.totalorder %v843, 0
        %vm845 = vcmp.lt.s32.totalorder %v843, 199
        %vm846 = vcmp.eq.s32.totalorder %v841, 0
        %vm847 = vcmp.eq.s32.totalorder %v841, 127
        %848 = vrot.lane.b32.xlu0 %v685, 1
        %v849 = vpop.permute.xlu0 %848
        %850 = vrot.lane.b32.xlu0 %v686, 1
        %v851 = vpop.permute.xlu0 %850
        %852 = vrot.lane.b32.xlu0 %v687, 1
        %v853 = vpop.permute.xlu0 %852
        %854 = vrot.lane.b32.xlu0 %v688, 1
        %v855 = vpop.permute.xlu0 %854
        %v856 = vsel %vm846, 1, 0
        %vm857 = vcmp.eq.s32.totalorder %v856, 1
        %859 = vset.pattern.permute.xlu0 0
        %860 = vperm.xlu0 %859, %v835
        %v861 = vpop.permute.xlu0 %860
        %864 = vset.pattern.permute.xlu0 0
        %865 = vperm.xlu0 %864, %v836
        %v866 = vpop.permute.xlu0 %865
        %869 = vset.pattern.permute.xlu0 0
        %870 = vperm.xlu0 %869, %v837
        %v871 = vpop.permute.xlu0 %870
        %874 = vset.pattern.permute.xlu0 0
        %875 = vperm.xlu0 %874, %v838
        %v876 = vpop.permute.xlu0 %875
        %v878 = vsel %vm857, %v861, %v849
        %v879 = vsel %vm857, %v866, %v851
        %v880 = vsel %vm857, %v871, %v853
        %v881 = vsel %vm857, %v876, %v855
        %v882 = vsel %vm844, 1, 0
        %vm883 = vcmp.eq.s32.totalorder %v882, 1
        %v884 = vsel %vm883, %v878, 0.0
        %v885 = vsel %vm883, %v879, 0.0
        %v886 = vsel %vm883, %v880, 0.0
        %v887 = vsel %vm883, %v881, 0.0
        %888 = vrot.lane.b32.xlu0 %v685, 127
        %v889 = vpop.permute.xlu0 %888
        %890 = vrot.lane.b32.xlu0 %v686, 127
        %v891 = vpop.permute.xlu0 %890
        %892 = vrot.lane.b32.xlu0 %v687, 127
        %v893 = vpop.permute.xlu0 %892
        %894 = vrot.lane.b32.xlu0 %v688, 127
        %v895 = vpop.permute.xlu0 %894
        %v896 = vsel %vm847, 1, 0
        %vm897 = vcmp.eq.s32.totalorder %v896, 1
        %898 = vset.pattern.permute.xlu0 1
        %899 = vperm.xlu0 %898, %v835
        %v900 = vpop.permute.xlu0 %899
        %902 = vset.pattern.permute.xlu0 1
        %903 = vperm.xlu0 %902, %v836
        %v904 = vpop.permute.xlu0 %903
        %906 = vset.pattern.permute.xlu0 1
        %907 = vperm.xlu0 %906, %v837
        %v908 = vpop.permute.xlu0 %907
        %910 = vset.pattern.permute.xlu0 1
        %911 = vperm.xlu0 %910, %v838
        %v912 = vpop.permute.xlu0 %911
        %v914 = vsel %vm897, %v900, %v889
        %v915 = vsel %vm897, %v904, %v891
        %v916 = vsel %vm897, %v908, %v893
        %v917 = vsel %vm897, %v912, %v895
        %v918 = vsel %vm845, 1, 0
        %vm919 = vcmp.eq.s32.totalorder %v918, 1
        %v920 = vsel %vm919, %v914, 0.0
        %v921 = vsel %vm919, %v915, 0.0
        %v922 = vsel %vm919, %v916, 0.0
        %v923 = vsel %vm919, %v917, 0.0
        %v924 = vld [vmem:[%s5] sm:$0xff]
        %v925 = vld [vmem:[%s5 + $0x8] sm:$0xff]
        %s926 = scalar_lea.vmem %s5, 16
        %v927 = vld [vmem:[%s926] sm:$0xff]
        %v928 = vld [vmem:[%s926 + $0x8] sm:$0xff]
        %v929 = vld [vmem:[%s4] sm:$0xff]
        %v930 = vld [vmem:[%s4 + $0x8] sm:$0xff]
        %s931 = scalar_lea.vmem %s4, 32
        %v932 = vld [vmem:[%s931] sm:$0xff]
        %v933 = vld [vmem:[%s931 + $0x8] sm:$0xff]
        %vm934 = vcmask 261120
        %v936 = vsel %vm934, %v932, 0
        %v939 = vsel %vm934, %v933, 0
        %941 = vmatprep.subr.mxu0 0.0
        %942 = vmatpush1.msra.mxu0 %v685
        %943 = vmatprep.subr.mxu0 0.0
        %944 = vmatpush1.msra.mxu0 %v686
        %945 = vmatprep.subr.mxu0 0.0
        %946 = vmatpush1.msra.mxu0 %v687
        %947 = vmatprep.subr.mxu0 0.0
        %948 = vmatpush1.msra.mxu0 %v688
        %949 = vmatprep.subr.mxu0 0.0
        %950 = vmatpush1.msra.mxu0 0.0
        %951 = vmatprep.subr.mxu0 0.0
        %952 = vmatpush1.msra.mxu0 0.0
        %953 = vmatprep.subr.mxu0 0.0
        %954 = vmatpush1.msra.mxu0 0.0
        %955 = vmatprep.subr.mxu0 0.0
        %956 = vmatpush1.msra.mxu0 0.0
        %957 = vmatprep.subr.mxu0 0.0
        %958 = vmatpush1.msra.mxu0 0.0
        %959 = vmatprep.subr.mxu0 0.0
        %960 = vmatpush1.msra.mxu0 0.0
        %961 = vmatprep.subr.mxu0 0.0
        %962 = vmatpush1.msra.mxu0 0.0
        %963 = vmatprep.subr.mxu0 0.0
        %964 = vmatpush1.msra.mxu0 0.0
        %965 = vmatprep.subr.mxu0 0.0
        %966 = vmatpush1.msra.mxu0 0.0
        %967 = vmatprep.subr.mxu0 0.0
        %968 = vmatpush1.msra.mxu0 0.0
        %969 = vmatprep.subr.mxu0 0.0
        %970 = vmatpush1.msra.mxu0 0.0
        %971 = vmatprep.subr.mxu0 0.0
        %972 = vmatpush1.msra.mxu0 0.0
        %973 = vmatprep.subr.mxu0 0.0
        %974 = vmatpush1.msra.mxu0 0.0
        %975 = vmatprep.subr.mxu0 0.0
        %976 = vmatpush1.msra.mxu0 0.0
        %977 = vmatprep.subr.mxu0 0.0
        %978 = vmatpush1.msra.mxu0 0.0
        %979 = vmatprep.subr.mxu0 0.0
        %980 = vmatpush1.msra.mxu0 0.0
        %981 = vmatprep.subr.mxu0 0.0
        %982 = vmatpush1.msra.mxu0 0.0
        %983 = vmatprep.subr.mxu0 0.0
        %984 = vmatpush1.msra.mxu0 0.0
        %985 = vmatprep.subr.mxu0 0.0
        %986 = vmatpush1.msra.mxu0 0.0
        %987 = vmatprep.subr.mxu0 0.0
        %988 = vmatpush1.msra.mxu0 0.0
        %989 = vmatprep.subr.mxu0 0.0
        %990 = vmatpush1.msra.mxu0 0.0
        %991 = vmatprep.subr.mxu0 0.0
        %992 = vmatpush1.msra.mxu0 0.0
        %993 = vmatprep.subr.mxu0 0.0
        %994 = vmatpush1.msra.mxu0 0.0
        %995 = vmatprep.subr.mxu0 0.0
        %996 = vmatpush1.msra.mxu0 0.0
        %997 = vmatprep.subr.mxu0 0.0
        %998 = vmatpush1.msra.mxu0 0.0
        %999 = vmatprep.subr.mxu0 0.0
        %1000 = vmatpush1.msra.mxu0 0.0
        %1001 = vmatprep.subr.mxu0 0.0
        %1002 = vmatpush1.msra.mxu0 0.0
        %1003 = vmatprep.subr.mxu0 0.0
        %1004 = vmatpush1.msra.mxu0 0.0
        %1005 = vmatprep.mubr.f32.mxu0 0.0
        %1006 = vmatmul.mubr.f32.gmra.mrb[0].mxu0 %v936
        %v1007 = vpop.f32.mrb[0].mxu0
        %v1008 = vadd.f32 0.0, %v1007
        %v1009 = vpop.f32.mrb[0].mxu0
        %1010 = vmatprep.mubr.f32.mxu0 0.0
        %1011 = vmatmul.mubr.f32.gmra.mrb[0].mxu0 %v939
        %v1012 = vpop.f32.mrb[0].mxu0
        %v1013 = vadd.f32 0.0, %v1012
        %v1014 = vpop.f32.mrb[0].mxu0
        %1015 = vdwg.mxu0
        %v1017 = vsel %vm934, %v929, 0
        %v1020 = vsel %vm934, %v930, 0
        %1022 = vmatprep.subr.mxu0 0.0
        %1023 = vmatpush1.msra.mxu0 %v884
        %1024 = vmatprep.subr.mxu0 0.0
        %1025 = vmatpush1.msra.mxu0 %v885
        %1026 = vmatprep.subr.mxu0 0.0
        %1027 = vmatpush1.msra.mxu0 %v886
        %1028 = vmatprep.subr.mxu0 0.0
        %1029 = vmatpush1.msra.mxu0 %v887
        %1030 = vmatprep.subr.mxu0 0.0
        %1031 = vmatpush1.msra.mxu0 0.0
        %1032 = vmatprep.subr.mxu0 0.0
        %1033 = vmatpush1.msra.mxu0 0.0
        %1034 = vmatprep.subr.mxu0 0.0
        %1035 = vmatpush1.msra.mxu0 0.0
        %1036 = vmatprep.subr.mxu0 0.0
        %1037 = vmatpush1.msra.mxu0 0.0
        %1038 = vmatprep.subr.mxu0 0.0
        %1039 = vmatpush1.msra.mxu0 0.0
        %1040 = vmatprep.subr.mxu0 0.0
        %1041 = vmatpush1.msra.mxu0 0.0
        %1042 = vmatprep.subr.mxu0 0.0
        %1043 = vmatpush1.msra.mxu0 0.0
        %1044 = vmatprep.subr.mxu0 0.0
        %1045 = vmatpush1.msra.mxu0 0.0
        %1046 = vmatprep.subr.mxu0 0.0
        %1047 = vmatpush1.msra.mxu0 0.0
        %1048 = vmatprep.subr.mxu0 0.0
        %1049 = vmatpush1.msra.mxu0 0.0
        %1050 = vmatprep.subr.mxu0 0.0
        %1051 = vmatpush1.msra.mxu0 0.0
        %1052 = vmatprep.subr.mxu0 0.0
        %1053 = vmatpush1.msra.mxu0 0.0
        %1054 = vmatprep.subr.mxu0 0.0
        %1055 = vmatpush1.msra.mxu0 0.0
        %1056 = vmatprep.subr.mxu0 0.0
        %1057 = vmatpush1.msra.mxu0 0.0
        %1058 = vmatprep.subr.mxu0 0.0
        %1059 = vmatpush1.msra.mxu0 0.0
        %1060 = vmatprep.subr.mxu0 0.0
        %1061 = vmatpush1.msra.mxu0 0.0
        %1062 = vmatprep.subr.mxu0 0.0
        %1063 = vmatpush1.msra.mxu0 0.0
        %1064 = vmatprep.subr.mxu0 0.0
        %1065 = vmatpush1.msra.mxu0 0.0
        %1066 = vmatprep.subr.mxu0 0.0
        %1067 = vmatpush1.msra.mxu0 0.0
        %1068 = vmatprep.subr.mxu0 0.0
        %1069 = vmatpush1.msra.mxu0 0.0
        %1070 = vmatprep.subr.mxu0 0.0
        %1071 = vmatpush1.msra.mxu0 0.0
        %1072 = vmatprep.subr.mxu0 0.0
        %1073 = vmatpush1.msra.mxu0 0.0
        %1074 = vmatprep.subr.mxu0 0.0
        %1075 = vmatpush1.msra.mxu0 0.0
        %1076 = vmatprep.subr.mxu0 0.0
        %1077 = vmatpush1.msra.mxu0 0.0
        %1078 = vmatprep.subr.mxu0 0.0
        %1079 = vmatpush1.msra.mxu0 0.0
        %1080 = vmatprep.subr.mxu0 0.0
        %1081 = vmatpush1.msra.mxu0 0.0
        %1082 = vmatprep.subr.mxu0 0.0
        %1083 = vmatpush1.msra.mxu0 0.0
        %1084 = vmatprep.subr.mxu0 0.0
        %1085 = vmatpush1.msra.mxu0 0.0
        %1086 = vmatprep.mubr.f32.mxu0 0.0
        %1087 = vmatmul.mubr.f32.gmra.mrb[0].mxu0 %v1017
        %v1088 = vpop.f32.mrb[0].mxu0
        %v1089 = vadd.f32 %v1008, %v1088
        %v1090 = vpop.f32.mrb[0].mxu0
        %1091 = vmatprep.mubr.f32.mxu0 0.0
        %1092 = vmatmul.mubr.f32.gmra.mrb[0].mxu0 %v1020
        %v1093 = vpop.f32.mrb[0].mxu0
        %v1094 = vadd.f32 %v1013, %v1093
        %v1095 = vpop.f32.mrb[0].mxu0
        %1096 = vdwg.mxu0
        %s1097 = scalar_lea.vmem %s4, 64
        %v1098 = vld [vmem:[%s1097] sm:$0xff]
        %v1099 = vld [vmem:[%s1097 + $0x8] sm:$0xff]
        %v1101 = vsel %vm934, %v1098, 0
        %v1104 = vsel %vm934, %v1099, 0
        %1106 = vmatprep.subr.mxu0 0.0
        %1107 = vmatpush1.msra.mxu0 %v920
        %1108 = vmatprep.subr.mxu0 0.0
        %1109 = vmatpush1.msra.mxu0 %v921
        %1110 = vmatprep.subr.mxu0 0.0
        %1111 = vmatpush1.msra.mxu0 %v922
        %1112 = vmatprep.subr.mxu0 0.0
        %1113 = vmatpush1.msra.mxu0 %v923
        %1114 = vmatprep.subr.mxu0 0.0
        %1115 = vmatpush1.msra.mxu0 0.0
        %1116 = vmatprep.subr.mxu0 0.0
        %1117 = vmatpush1.msra.mxu0 0.0
        %1118 = vmatprep.subr.mxu0 0.0
        %1119 = vmatpush1.msra.mxu0 0.0
        %1120 = vmatprep.subr.mxu0 0.0
        %1121 = vmatpush1.msra.mxu0 0.0
        %1122 = vmatprep.subr.mxu0 0.0
        %1123 = vmatpush1.msra.mxu0 0.0
        %1124 = vmatprep.subr.mxu0 0.0
        %1125 = vmatpush1.msra.mxu0 0.0
        %1126 = vmatprep.subr.mxu0 0.0
        %1127 = vmatpush1.msra.mxu0 0.0
        %1128 = vmatprep.subr.mxu0 0.0
        %1129 = vmatpush1.msra.mxu0 0.0
        %1130 = vmatprep.subr.mxu0 0.0
        %1131 = vmatpush1.msra.mxu0 0.0
        %1132 = vmatprep.subr.mxu0 0.0
        %1133 = vmatpush1.msra.mxu0 0.0
        %1134 = vmatprep.subr.mxu0 0.0
        %1135 = vmatpush1.msra.mxu0 0.0
        %1136 = vmatprep.subr.mxu0 0.0
        %1137 = vmatpush1.msra.mxu0 0.0
        %1138 = vmatprep.subr.mxu0 0.0
        %1139 = vmatpush1.msra.mxu0 0.0
        %1140 = vmatprep.subr.mxu0 0.0
        %1141 = vmatpush1.msra.mxu0 0.0
        %1142 = vmatprep.subr.mxu0 0.0
        %1143 = vmatpush1.msra.mxu0 0.0
        %1144 = vmatprep.subr.mxu0 0.0
        %1145 = vmatpush1.msra.mxu0 0.0
        %1146 = vmatprep.subr.mxu0 0.0
        %1147 = vmatpush1.msra.mxu0 0.0
        %1148 = vmatprep.subr.mxu0 0.0
        %1149 = vmatpush1.msra.mxu0 0.0
        %1150 = vmatprep.subr.mxu0 0.0
        %1151 = vmatpush1.msra.mxu0 0.0
        %1152 = vmatprep.subr.mxu0 0.0
        %1153 = vmatpush1.msra.mxu0 0.0
        %1154 = vmatprep.subr.mxu0 0.0
        %1155 = vmatpush1.msra.mxu0 0.0
        %1156 = vmatprep.subr.mxu0 0.0
        %1157 = vmatpush1.msra.mxu0 0.0
        %1158 = vmatprep.subr.mxu0 0.0
        %1159 = vmatpush1.msra.mxu0 0.0
        %1160 = vmatprep.subr.mxu0 0.0
        %1161 = vmatpush1.msra.mxu0 0.0
        %1162 = vmatprep.subr.mxu0 0.0
        %1163 = vmatpush1.msra.mxu0 0.0
        %1164 = vmatprep.subr.mxu0 0.0
        %1165 = vmatpush1.msra.mxu0 0.0
        %1166 = vmatprep.subr.mxu0 0.0
        %1167 = vmatpush1.msra.mxu0 0.0
        %1168 = vmatprep.subr.mxu0 0.0
        %1169 = vmatpush1.msra.mxu0 0.0
        %1170 = vmatprep.mubr.f32.mxu0 0.0
        %1171 = vmatmul.mubr.f32.gmra.mrb[0].mxu0 %v1101
        %v1172 = vpop.f32.mrb[0].mxu0
        %v1173 = vadd.f32 0.0, %v1172
        %v1174 = vpop.f32.mrb[0].mxu0
        %1175 = vmatprep.mubr.f32.mxu0 0.0
        %1176 = vmatmul.mubr.f32.gmra.mrb[0].mxu0 %v1104
        %v1177 = vpop.f32.mrb[0].mxu0
        %v1178 = vadd.f32 0.0, %v1177
        %v1179 = vpop.f32.mrb[0].mxu0
        %1180 = vdwg.mxu0
        %v1181 = vadd.f32 %v1089, %v1173
        %v1182 = vadd.f32 %v1094, %v1178
        %1184 = vset.pattern.permute.xlu0 0
        %1185 = vperm.xlu0 %1184, %v924
        %v1186 = vpop.permute.xlu0 %1185
        %1189 = vset.pattern.permute.xlu0 0
        %1190 = vperm.xlu0 %1189, %v925
        %v1191 = vpop.permute.xlu0 %1190
        %v1193 = vadd.f32 %v1181, %v1186
        %v1194 = vadd.f32 %v1182, %v1191
        %s1195 = scalar_lea.vmem %s4, 16
        %v1196 = vld [vmem:[%s1195] sm:$0xff]
        %v1197 = vld [vmem:[%s1195 + $0x8] sm:$0xff]
        %s1198 = scalar_lea.vmem %s4, 48
        %v1199 = vld [vmem:[%s1198] sm:$0xff]
        %v1200 = vld [vmem:[%s1198 + $0x8] sm:$0xff]
        %v1202 = vsel %vm934, %v1199, 0
        %v1205 = vsel %vm934, %v1200, 0
        %1207 = vmatprep.subr.mxu0 0.0
        %1208 = vmatpush1.msra.mxu0 %v685
        %1209 = vmatprep.subr.mxu0 0.0
        %1210 = vmatpush1.msra.mxu0 %v686
        %1211 = vmatprep.subr.mxu0 0.0
        %1212 = vmatpush1.msra.mxu0 %v687
        %1213 = vmatprep.subr.mxu0 0.0
        %1214 = vmatpush1.msra.mxu0 %v688
        %1215 = vmatprep.subr.mxu0 0.0
        %1216 = vmatpush1.msra.mxu0 0.0
        %1217 = vmatprep.subr.mxu0 0.0
        %1218 = vmatpush1.msra.mxu0 0.0
        %1219 = vmatprep.subr.mxu0 0.0
        %1220 = vmatpush1.msra.mxu0 0.0
        %1221 = vmatprep.subr.mxu0 0.0
        %1222 = vmatpush1.msra.mxu0 0.0
        %1223 = vmatprep.subr.mxu0 0.0
        %1224 = vmatpush1.msra.mxu0 0.0
        %1225 = vmatprep.subr.mxu0 0.0
        %1226 = vmatpush1.msra.mxu0 0.0
        %1227 = vmatprep.subr.mxu0 0.0
        %1228 = vmatpush1.msra.mxu0 0.0
        %1229 = vmatprep.subr.mxu0 0.0
        %1230 = vmatpush1.msra.mxu0 0.0
        %1231 = vmatprep.subr.mxu0 0.0
        %1232 = vmatpush1.msra.mxu0 0.0
        %1233 = vmatprep.subr.mxu0 0.0
        %1234 = vmatpush1.msra.mxu0 0.0
        %1235 = vmatprep.subr.mxu0 0.0
        %1236 = vmatpush1.msra.mxu0 0.0
        %1237 = vmatprep.subr.mxu0 0.0
        %1238 = vmatpush1.msra.mxu0 0.0
        %1239 = vmatprep.subr.mxu0 0.0
        %1240 = vmatpush1.msra.mxu0 0.0
        %1241 = vmatprep.subr.mxu0 0.0
        %1242 = vmatpush1.msra.mxu0 0.0
        %1243 = vmatprep.subr.mxu0 0.0
        %1244 = vmatpush1.msra.mxu0 0.0
        %1245 = vmatprep.subr.mxu0 0.0
        %1246 = vmatpush1.msra.mxu0 0.0
        %1247 = vmatprep.subr.mxu0 0.0
        %1248 = vmatpush1.msra.mxu0 0.0
        %1249 = vmatprep.subr.mxu0 0.0
        %1250 = vmatpush1.msra.mxu0 0.0
        %1251 = vmatprep.subr.mxu0 0.0
        %1252 = vmatpush1.msra.mxu0 0.0
        %1253 = vmatprep.subr.mxu0 0.0
        %1254 = vmatpush1.msra.mxu0 0.0
        %1255 = vmatprep.subr.mxu0 0.0
        %1256 = vmatpush1.msra.mxu0 0.0
        %1257 = vmatprep.subr.mxu0 0.0
        %1258 = vmatpush1.msra.mxu0 0.0
        %1259 = vmatprep.subr.mxu0 0.0
        %1260 = vmatpush1.msra.mxu0 0.0
        %1261 = vmatprep.subr.mxu0 0.0
        %1262 = vmatpush1.msra.mxu0 0.0
        %1263 = vmatprep.subr.mxu0 0.0
        %1264 = vmatpush1.msra.mxu0 0.0
        %1265 = vmatprep.subr.mxu0 0.0
        %1266 = vmatpush1.msra.mxu0 0.0
        %1267 = vmatprep.subr.mxu0 0.0
        %1268 = vmatpush1.msra.mxu0 0.0
        %1269 = vmatprep.subr.mxu0 0.0
        %1270 = vmatpush1.msra.mxu0 0.0
        %1271 = vmatprep.mubr.f32.mxu0 0.0
        %1272 = vmatmul.mubr.f32.gmra.mrb[0].mxu0 %v1202
        %v1273 = vpop.f32.mrb[0].mxu0
        %v1274 = vadd.f32 0.0, %v1273
        %v1275 = vpop.f32.mrb[0].mxu0
        %1276 = vmatprep.mubr.f32.mxu0 0.0
        %1277 = vmatmul.mubr.f32.gmra.mrb[0].mxu0 %v1205
        %v1278 = vpop.f32.mrb[0].mxu0
        %v1279 = vadd.f32 0.0, %v1278
        %v1280 = vpop.f32.mrb[0].mxu0
        %1281 = vdwg.mxu0
        %v1283 = vsel %vm934, %v1196, 0
        %v1286 = vsel %vm934, %v1197, 0
        %1288 = vmatprep.subr.mxu0 0.0
        %1289 = vmatpush1.msra.mxu0 %v884
        %1290 = vmatprep.subr.mxu0 0.0
        %1291 = vmatpush1.msra.mxu0 %v885
        %1292 = vmatprep.subr.mxu0 0.0
        %1293 = vmatpush1.msra.mxu0 %v886
        %1294 = vmatprep.subr.mxu0 0.0
        %1295 = vmatpush1.msra.mxu0 %v887
        %1296 = vmatprep.subr.mxu0 0.0
        %1297 = vmatpush1.msra.mxu0 0.0
        %1298 = vmatprep.subr.mxu0 0.0
        %1299 = vmatpush1.msra.mxu0 0.0
        %1300 = vmatprep.subr.mxu0 0.0
        %1301 = vmatpush1.msra.mxu0 0.0
        %1302 = vmatprep.subr.mxu0 0.0
        %1303 = vmatpush1.msra.mxu0 0.0
        %1304 = vmatprep.subr.mxu0 0.0
        %1305 = vmatpush1.msra.mxu0 0.0
        %1306 = vmatprep.subr.mxu0 0.0
        %1307 = vmatpush1.msra.mxu0 0.0
        %1308 = vmatprep.subr.mxu0 0.0
        %1309 = vmatpush1.msra.mxu0 0.0
        %1310 = vmatprep.subr.mxu0 0.0
        %1311 = vmatpush1.msra.mxu0 0.0
        %1312 = vmatprep.subr.mxu0 0.0
        %1313 = vmatpush1.msra.mxu0 0.0
        %1314 = vmatprep.subr.mxu0 0.0
        %1315 = vmatpush1.msra.mxu0 0.0
        %1316 = vmatprep.subr.mxu0 0.0
        %1317 = vmatpush1.msra.mxu0 0.0
        %1318 = vmatprep.subr.mxu0 0.0
        %1319 = vmatpush1.msra.mxu0 0.0
        %1320 = vmatprep.subr.mxu0 0.0
        %1321 = vmatpush1.msra.mxu0 0.0
        %1322 = vmatprep.subr.mxu0 0.0
        %1323 = vmatpush1.msra.mxu0 0.0
        %1324 = vmatprep.subr.mxu0 0.0
        %1325 = vmatpush1.msra.mxu0 0.0
        %1326 = vmatprep.subr.mxu0 0.0
        %1327 = vmatpush1.msra.mxu0 0.0
        %1328 = vmatprep.subr.mxu0 0.0
        %1329 = vmatpush1.msra.mxu0 0.0
        %1330 = vmatprep.subr.mxu0 0.0
        %1331 = vmatpush1.msra.mxu0 0.0
        %1332 = vmatprep.subr.mxu0 0.0
        %1333 = vmatpush1.msra.mxu0 0.0
        %1334 = vmatprep.subr.mxu0 0.0
        %1335 = vmatpush1.msra.mxu0 0.0
        %1336 = vmatprep.subr.mxu0 0.0
        %1337 = vmatpush1.msra.mxu0 0.0
        %1338 = vmatprep.subr.mxu0 0.0
        %1339 = vmatpush1.msra.mxu0 0.0
        %1340 = vmatprep.subr.mxu0 0.0
        %1341 = vmatpush1.msra.mxu0 0.0
        %1342 = vmatprep.subr.mxu0 0.0
        %1343 = vmatpush1.msra.mxu0 0.0
        %1344 = vmatprep.subr.mxu0 0.0
        %1345 = vmatpush1.msra.mxu0 0.0
        %1346 = vmatprep.subr.mxu0 0.0
        %1347 = vmatpush1.msra.mxu0 0.0
        %1348 = vmatprep.subr.mxu0 0.0
        %1349 = vmatpush1.msra.mxu0 0.0
        %1350 = vmatprep.subr.mxu0 0.0
        %1351 = vmatpush1.msra.mxu0 0.0
        %1352 = vmatprep.mubr.f32.mxu0 0.0
        %1353 = vmatmul.mubr.f32.gmra.mrb[0].mxu0 %v1283
        %v1354 = vpop.f32.mrb[0].mxu0
        %v1355 = vadd.f32 %v1274, %v1354
        %v1356 = vpop.f32.mrb[0].mxu0
        %1357 = vmatprep.mubr.f32.mxu0 0.0
        %1358 = vmatmul.mubr.f32.gmra.mrb[0].mxu0 %v1286
        %v1359 = vpop.f32.mrb[0].mxu0
        %v1360 = vadd.f32 %v1279, %v1359
        %v1361 = vpop.f32.mrb[0].mxu0
        %1362 = vdwg.mxu0
        %s1363 = scalar_lea.vmem %s4, 80
        %v1364 = vld [vmem:[%s1363] sm:$0xff]
        %v1365 = vld [vmem:[%s1363 + $0x8] sm:$0xff]
        %v1367 = vsel %vm934, %v1364, 0
        %v1370 = vsel %vm934, %v1365, 0
        %1372 = vmatprep.subr.mxu0 0.0
        %1373 = vmatpush1.msra.mxu0 %v920
        %1374 = vmatprep.subr.mxu0 0.0
        %1375 = vmatpush1.msra.mxu0 %v921
        %1376 = vmatprep.subr.mxu0 0.0
        %1377 = vmatpush1.msra.mxu0 %v922
        %1378 = vmatprep.subr.mxu0 0.0
        %1379 = vmatpush1.msra.mxu0 %v923
        %1380 = vmatprep.subr.mxu0 0.0
        %1381 = vmatpush1.msra.mxu0 0.0
        %1382 = vmatprep.subr.mxu0 0.0
        %1383 = vmatpush1.msra.mxu0 0.0
        %1384 = vmatprep.subr.mxu0 0.0
        %1385 = vmatpush1.msra.mxu0 0.0
        %1386 = vmatprep.subr.mxu0 0.0
        %1387 = vmatpush1.msra.mxu0 0.0
        %1388 = vmatprep.subr.mxu0 0.0
        %1389 = vmatpush1.msra.mxu0 0.0
        %1390 = vmatprep.subr.mxu0 0.0
        %1391 = vmatpush1.msra.mxu0 0.0
        %1392 = vmatprep.subr.mxu0 0.0
        %1393 = vmatpush1.msra.mxu0 0.0
        %1394 = vmatprep.subr.mxu0 0.0
        %1395 = vmatpush1.msra.mxu0 0.0
        %1396 = vmatprep.subr.mxu0 0.0
        %1397 = vmatpush1.msra.mxu0 0.0
        %1398 = vmatprep.subr.mxu0 0.0
        %1399 = vmatpush1.msra.mxu0 0.0
        %1400 = vmatprep.subr.mxu0 0.0
        %1401 = vmatpush1.msra.mxu0 0.0
        %1402 = vmatprep.subr.mxu0 0.0
        %1403 = vmatpush1.msra.mxu0 0.0
        %1404 = vmatprep.subr.mxu0 0.0
        %1405 = vmatpush1.msra.mxu0 0.0
        %1406 = vmatprep.subr.mxu0 0.0
        %1407 = vmatpush1.msra.mxu0 0.0
        %1408 = vmatprep.subr.mxu0 0.0
        %1409 = vmatpush1.msra.mxu0 0.0
        %1410 = vmatprep.subr.mxu0 0.0
        %1411 = vmatpush1.msra.mxu0 0.0
        %1412 = vmatprep.subr.mxu0 0.0
        %1413 = vmatpush1.msra.mxu0 0.0
        %1414 = vmatprep.subr.mxu0 0.0
        %1415 = vmatpush1.msra.mxu0 0.0
        %1416 = vmatprep.subr.mxu0 0.0
        %1417 = vmatpush1.msra.mxu0 0.0
        %1418 = vmatprep.subr.mxu0 0.0
        %1419 = vmatpush1.msra.mxu0 0.0
        %1420 = vmatprep.subr.mxu0 0.0
        %1421 = vmatpush1.msra.mxu0 0.0
        %1422 = vmatprep.subr.mxu0 0.0
        %1423 = vmatpush1.msra.mxu0 0.0
        %1424 = vmatprep.subr.mxu0 0.0
        %1425 = vmatpush1.msra.mxu0 0.0
        %1426 = vmatprep.subr.mxu0 0.0
        %1427 = vmatpush1.msra.mxu0 0.0
        %1428 = vmatprep.subr.mxu0 0.0
        %1429 = vmatpush1.msra.mxu0 0.0
        %1430 = vmatprep.subr.mxu0 0.0
        %1431 = vmatpush1.msra.mxu0 0.0
        %1432 = vmatprep.subr.mxu0 0.0
        %1433 = vmatpush1.msra.mxu0 0.0
        %1434 = vmatprep.subr.mxu0 0.0
        %1435 = vmatpush1.msra.mxu0 0.0
        %1436 = vmatprep.mubr.f32.mxu0 0.0
        %1437 = vmatmul.mubr.f32.gmra.mrb[0].mxu0 %v1367
        %v1438 = vpop.f32.mrb[0].mxu0
        %v1439 = vadd.f32 0.0, %v1438
        %v1440 = vpop.f32.mrb[0].mxu0
        %1441 = vmatprep.mubr.f32.mxu0 0.0
        %1442 = vmatmul.mubr.f32.gmra.mrb[0].mxu0 %v1370
        %v1443 = vpop.f32.mrb[0].mxu0
        %v1444 = vadd.f32 0.0, %v1443
        %v1445 = vpop.f32.mrb[0].mxu0
        %1446 = vdwg.mxu0
        %v1447 = vadd.f32 %v1355, %v1439
        %v1448 = vadd.f32 %v1360, %v1444
        %1450 = vset.pattern.permute.xlu0 0
        %1451 = vperm.xlu0 %1450, %v927
        %v1452 = vpop.permute.xlu0 %1451
        %1455 = vset.pattern.permute.xlu0 0
        %1456 = vperm.xlu0 %1455, %v928
        %v1457 = vpop.permute.xlu0 %1456
        %v1459 = vadd.f32 %v1447, %v1452
        %v1460 = vadd.f32 %v1448, %v1457
        %v1461 = vtanh.pop %v1193
        %v1462 = vtanh.pop %v1194
        %v1463 = vxor.u32 %v1459, 2147483648
        %v1464 = vxor.u32 %v1460, 2147483648
        %v1465 = vmul.f32 %v1463, 1.442695
        %v1466 = vpow.pop %v1465
        %v1467 = vmul.f32 %v1464, 1.442695
        %v1468 = vpow.pop %v1467
        %v1469 = vadd.f32 %v1466, 1.0
        %v1470 = vadd.f32 %v1468, 1.0
        %v1471 = vrcp.pop %v1469
        %v1472 = vmul.f32 1.0, %v1471
        %v1473 = vrcp.pop %v1470
        %v1474 = vmul.f32 1.0, %v1473
        %v1475 = vmul.f32 %v1461, %v1472
        %v1476 = vmul.f32 %v1462, %v1474
        %v1477 = vxor.u32 %v1193, 2147483648
        %v1478 = vxor.u32 %v1194, 2147483648
        %v1479 = vmul.f32 %v1477, 1.442695
        %v1480 = vpow.pop %v1479
        %v1481 = vmul.f32 %v1478, 1.442695
        %v1482 = vpow.pop %v1481
        %v1483 = vadd.f32 %v1480, 1.0
        %v1484 = vadd.f32 %v1482, 1.0
        %v1485 = vrcp.pop %v1483
        %v1486 = vmul.f32 1.0, %v1485
        %v1487 = vrcp.pop %v1484
        %v1488 = vmul.f32 1.0, %v1487
        %v1489 = vtanh.pop %v1459
        %v1490 = vtanh.pop %v1460
        %v1491 = vmul.f32 %v1486, %v1489
        %v1492 = vmul.f32 %v1488, %v1490
        %vm1493 = vcmp.ge.f32.partialorder %v1475, 0.0
        %vm1494 = vcmp.ge.f32.partialorder %v1476, 0.0
        %1495 = vset.pattern.permute.xlu0 1
        %1496 = vperm.xlu0 %1495, %v600
        %v1497 = vpop.permute.xlu0 %1496
        %v1499 = vmul.f32 %v1497, %v1475
        %v1500 = vmul.f32 %v1497, %v1476
        %v1501 = vsel %vm1493, %v1475, %v1499
        %v1502 = vsel %vm1494, %v1476, %v1500
        %vm1503 = vcmp.ge.f32.partialorder %v1491, 0.0
        %vm1504 = vcmp.ge.f32.partialorder %v1492, 0.0
        %v1505 = vmul.f32 %v1497, %v1491
        %v1506 = vmul.f32 %v1497, %v1492
        %v1507 = vsel %vm1503, %v1491, %v1505
        %v1508 = vsel %vm1504, %v1492, %v1506
        %v1509 = vadd.f32 %v1501, %v1502
        %v1510 = vrot.slane %v1509, 4
        %v1511 = vadd.f32 %v1509, %v1510
        %v1512 = vrot.slane %v1511, 2
        %v1513 = vadd.f32 %v1511, %v1512
        %v1514 = vrot.slane %v1513, 1
        %v1515 = vadd.f32 %v1513, %v1514
        %v1516 = vadd.f32 %v1507, %v1508
        %v1517 = vrot.slane %v1516, 4
        %v1518 = vadd.f32 %v1516, %v1517
        %v1519 = vrot.slane %v1518, 2
        %v1520 = vadd.f32 %v1518, %v1519
        %v1521 = vrot.slane %v1520, 1
        %v1522 = vadd.f32 %v1520, %v1521
        %v1523 = vadd.f32 %v1515, %v1522
        %v1524 = vmul.f32 %v1523, 0.03125
        %v1525 = vmul.f32 %v1501, %v1501
        %v1526 = vmul.f32 %v1502, %v1502
        %v1527 = vadd.f32 %v1525, %v1526
        %v1528 = vrot.slane %v1527, 4
        %v1529 = vadd.f32 %v1527, %v1528
        %v1530 = vrot.slane %v1529, 2
        %v1531 = vadd.f32 %v1529, %v1530
        %v1532 = vrot.slane %v1531, 1
        %v1533 = vadd.f32 %v1531, %v1532
        %v1534 = vmul.f32 %v1507, %v1507
        %v1535 = vmul.f32 %v1508, %v1508
        %v1536 = vadd.f32 %v1534, %v1535
        %v1537 = vrot.slane %v1536, 4
        %v1538 = vadd.f32 %v1536, %v1537
        %v1539 = vrot.slane %v1538, 2
        %v1540 = vadd.f32 %v1538, %v1539
        %v1541 = vrot.slane %v1540, 1
        %v1542 = vadd.f32 %v1540, %v1541
        %v1543 = vadd.f32 %v1533, %v1542
        %v1544 = vmul.f32 %v1543, 0.03125
        %v1545 = vmul.f32 %v1524, %v1524
        %v1546 = vsub.f32 %v1544, %v1545
        %v1547 = vadd.f32 %v1546, 1e-05
        %v1548 = vrsqrt.pop %v1547
        %v1549 = vsub.f32 %v1501, %v1524
        %v1550 = vsub.f32 %v1502, %v1524
        %v1551 = vmul.f32 %v1549, %v1548
        %v1552 = vmul.f32 %v1550, %v1548
        %1553 = vset.pattern.permute.xlu0 1
        %1554 = vperm.xlu0 %1553, %v924
        %v1555 = vpop.permute.xlu0 %1554
        %1557 = vset.pattern.permute.xlu0 1
        %1558 = vperm.xlu0 %1557, %v925
        %v1559 = vpop.permute.xlu0 %1558
        %v1561 = vmul.f32 %v1555, %v1551
        %v1562 = vmul.f32 %v1559, %v1552
        %1563 = vset.pattern.permute.xlu0 2
        %1564 = vperm.xlu0 %1563, %v924
        %v1565 = vpop.permute.xlu0 %1564
        %1567 = vset.pattern.permute.xlu0 2
        %1568 = vperm.xlu0 %1567, %v925
        %v1569 = vpop.permute.xlu0 %1568
        %v1571 = vadd.f32 %v1561, %v1565
        %v1572 = vadd.f32 %v1562, %v1569
        %v1573 = vsub.f32 %v1507, %v1524
        %v1574 = vsub.f32 %v1508, %v1524
        %v1575 = vmul.f32 %v1573, %v1548
        %v1576 = vmul.f32 %v1574, %v1548
        %1577 = vset.pattern.permute.xlu0 1
        %1578 = vperm.xlu0 %1577, %v927
        %v1579 = vpop.permute.xlu0 %1578
        %1581 = vset.pattern.permute.xlu0 1
        %1582 = vperm.xlu0 %1581, %v928
        %v1583 = vpop.permute.xlu0 %1582
        %v1585 = vmul.f32 %v1579, %v1575
        %v1586 = vmul.f32 %v1583, %v1576
        %1587 = vset.pattern.permute.xlu0 2
        %1588 = vperm.xlu0 %1587, %v927
        %v1589 = vpop.permute.xlu0 %1588
        %1591 = vset.pattern.permute.xlu0 2
        %1592 = vperm.xlu0 %1591, %v928
        %v1593 = vpop.permute.xlu0 %1592
        %v1595 = vadd.f32 %v1585, %v1589
        %v1596 = vadd.f32 %v1586, %v1593
        %v1597 = vld [vmem:[%s6] sm:$0xff]
        %v1598 = vld [vmem:[%s6 + $0x8] sm:$0xff]
        %v1599 = vld [vmem:[%s6 + $0x10] sm:$0xff]
        %v1600 = vld [vmem:[%s6 + $0x18] sm:$0xff]
        %v1601 = vld [vmem:[%s6 + $0x20] sm:$0xff]
        %v1602 = vld [vmem:[%s6 + $0x28] sm:$0xff]
        %s1603 = scalar_lea.vmem %s6, 48
        %v1604 = vld [vmem:[%s1603] sm:$0xff]
        %v1605 = vld [vmem:[%s1603 + $0x8] sm:$0xff]
        %v1606 = vld [vmem:[%s1603 + $0x10] sm:$0xff]
        %v1607 = vld [vmem:[%s1603 + $0x18] sm:$0xff]
        %v1608 = vld [vmem:[%s1603 + $0x20] sm:$0xff]
        %v1609 = vld [vmem:[%s1603 + $0x28] sm:$0xff]
        %v1611 = vsel %vm494, %v1604, 0
        %v1614 = vsel %vm494, %v1605, 0
        %v1617 = vsel %vm494, %v1606, 0
        %v1620 = vsel %vm494, %v1607, 0
        %v1623 = vsel %vm494, %v1608, 0
        %v1626 = vsel %vm494, %v1609, 0
        %1628 = vmatprep.subr.mxu0 0.0
        %1629 = vmatpush1.msra.mxu0 %v1595
        %1630 = vmatprep.subr.mxu0 0.0
        %1631 = vmatpush1.msra.mxu0 %v1596
        %1632 = vmatprep.subr.mxu0 0.0
        %1633 = vmatpush1.msra.mxu0 0.0
        %1634 = vmatprep.subr.mxu0 0.0
        %1635 = vmatpush1.msra.mxu0 0.0
        %1636 = vmatprep.subr.mxu0 0.0
        %1637 = vmatpush1.msra.mxu0 0.0
        %1638 = vmatprep.subr.mxu0 0.0
        %1639 = vmatpush1.msra.mxu0 0.0
        %1640 = vmatprep.subr.mxu0 0.0
        %1641 = vmatpush1.msra.mxu0 0.0
        %1642 = vmatprep.subr.mxu0 0.0
        %1643 = vmatpush1.msra.mxu0 0.0
        %1644 = vmatprep.subr.mxu0 0.0
        %1645 = vmatpush1.msra.mxu0 0.0
        %1646 = vmatprep.subr.mxu0 0.0
        %1647 = vmatpush1.msra.mxu0 0.0
        %1648 = vmatprep.subr.mxu0 0.0
        %1649 = vmatpush1.msra.mxu0 0.0
        %1650 = vmatprep.subr.mxu0 0.0
        %1651 = vmatpush1.msra.mxu0 0.0
        %1652 = vmatprep.subr.mxu0 0.0
        %1653 = vmatpush1.msra.mxu0 0.0
        %1654 = vmatprep.subr.mxu0 0.0
        %1655 = vmatpush1.msra.mxu0 0.0
        %1656 = vmatprep.subr.mxu0 0.0
        %1657 = vmatpush1.msra.mxu0 0.0
        %1658 = vmatprep.subr.mxu0 0.0
        %1659 = vmatpush1.msra.mxu0 0.0
        %1660 = vmatprep.subr.mxu0 0.0
        %1661 = vmatpush1.msra.mxu0 0.0
        %1662 = vmatprep.subr.mxu0 0.0
        %1663 = vmatpush1.msra.mxu0 0.0
        %1664 = vmatprep.subr.mxu0 0.0
        %1665 = vmatpush1.msra.mxu0 0.0
        %1666 = vmatprep.subr.mxu0 0.0
        %1667 = vmatpush1.msra.mxu0 0.0
        %1668 = vmatprep.subr.mxu0 0.0
        %1669 = vmatpush1.msra.mxu0 0.0
        %1670 = vmatprep.subr.mxu0 0.0
        %1671 = vmatpush1.msra.mxu0 0.0
        %1672 = vmatprep.subr.mxu0 0.0
        %1673 = vmatpush1.msra.mxu0 0.0
        %1674 = vmatprep.subr.mxu0 0.0
        %1675 = vmatpush1.msra.mxu0 0.0
        %1676 = vmatprep.subr.mxu0 0.0
        %1677 = vmatpush1.msra.mxu0 0.0
        %1678 = vmatprep.subr.mxu0 0.0
        %1679 = vmatpush1.msra.mxu0 0.0
        %1680 = vmatprep.subr.mxu0 0.0
        %1681 = vmatpush1.msra.mxu0 0.0
        %1682 = vmatprep.subr.mxu0 0.0
        %1683 = vmatpush1.msra.mxu0 0.0
        %1684 = vmatprep.subr.mxu0 0.0
        %1685 = vmatpush1.msra.mxu0 0.0
        %1686 = vmatprep.subr.mxu0 0.0
        %1687 = vmatpush1.msra.mxu0 0.0
        %1688 = vmatprep.subr.mxu0 0.0
        %1689 = vmatpush1.msra.mxu0 0.0
        %1690 = vmatprep.subr.mxu0 0.0
        %1691 = vmatpush1.msra.mxu0 0.0
        %1692 = vmatprep.mubr.f32.mxu0 0.0
        %1693 = vmatmul.mubr.f32.gmra.mrb[0].mxu0 %v1611
        %v1694 = vpop.f32.mrb[0].mxu0
        %v1695 = vadd.f32 0.0, %v1694
        %v1696 = vpop.f32.mrb[0].mxu0
        %1697 = vmatprep.mubr.f32.mxu0 0.0
        %1698 = vmatmul.mubr.f32.gmra.mrb[0].mxu0 %v1614
        %v1699 = vpop.f32.mrb[0].mxu0
        %v1700 = vadd.f32 0.0, %v1699
        %v1701 = vpop.f32.mrb[0].mxu0
        %1702 = vmatprep.mubr.f32.mxu0 0.0
        %1703 = vmatmul.mubr.f32.gmra.mrb[0].mxu0 %v1617
        %v1704 = vpop.f32.mrb[0].mxu0
        %v1705 = vadd.f32 0.0, %v1704
        %v1706 = vpop.f32.mrb[0].mxu0
        %1707 = vmatprep.mubr.f32.mxu0 0.0
        %1708 = vmatmul.mubr.f32.gmra.mrb[0].mxu0 %v1620
        %v1709 = vpop.f32.mrb[0].mxu0
        %v1710 = vadd.f32 0.0, %v1709
        %v1711 = vpop.f32.mrb[0].mxu0
        %1712 = vmatprep.mubr.f32.mxu0 0.0
        %1713 = vmatmul.mubr.f32.gmra.mrb[0].mxu0 %v1623
        %v1714 = vpop.f32.mrb[0].mxu0
        %v1715 = vadd.f32 0.0, %v1714
        %v1716 = vpop.f32.mrb[0].mxu0
        %1717 = vmatprep.mubr.f32.mxu0 0.0
        %1718 = vmatmul.mubr.f32.gmra.mrb[0].mxu0 %v1626
        %v1719 = vpop.f32.mrb[0].mxu0
        %v1720 = vadd.f32 0.0, %v1719
        %v1721 = vpop.f32.mrb[0].mxu0
        %1722 = vdwg.mxu0
        %v1724 = vsel %vm494, %v1597, 0
        %v1727 = vsel %vm494, %v1598, 0
        %v1730 = vsel %vm494, %v1599, 0
        %v1733 = vsel %vm494, %v1600, 0
        %v1736 = vsel %vm494, %v1601, 0
        %v1739 = vsel %vm494, %v1602, 0
        %1741 = vmatprep.subr.mxu0 0.0
        %1742 = vmatpush1.msra.mxu0 %v1571
        %1743 = vmatprep.subr.mxu0 0.0
        %1744 = vmatpush1.msra.mxu0 %v1572
        %1745 = vmatprep.subr.mxu0 0.0
        %1746 = vmatpush1.msra.mxu0 0.0
        %1747 = vmatprep.subr.mxu0 0.0
        %1748 = vmatpush1.msra.mxu0 0.0
        %1749 = vmatprep.subr.mxu0 0.0
        %1750 = vmatpush1.msra.mxu0 0.0
        %1751 = vmatprep.subr.mxu0 0.0
        %1752 = vmatpush1.msra.mxu0 0.0
        %1753 = vmatprep.subr.mxu0 0.0
        %1754 = vmatpush1.msra.mxu0 0.0
        %1755 = vmatprep.subr.mxu0 0.0
        %1756 = vmatpush1.msra.mxu0 0.0
        %1757 = vmatprep.subr.mxu0 0.0
        %1758 = vmatpush1.msra.mxu0 0.0
        %1759 = vmatprep.subr.mxu0 0.0
        %1760 = vmatpush1.msra.mxu0 0.0
        %1761 = vmatprep.subr.mxu0 0.0
        %1762 = vmatpush1.msra.mxu0 0.0
        %1763 = vmatprep.subr.mxu0 0.0
        %1764 = vmatpush1.msra.mxu0 0.0
        %1765 = vmatprep.subr.mxu0 0.0
        %1766 = vmatpush1.msra.mxu0 0.0
        %1767 = vmatprep.subr.mxu0 0.0
        %1768 = vmatpush1.msra.mxu0 0.0
        %1769 = vmatprep.subr.mxu0 0.0
        %1770 = vmatpush1.msra.mxu0 0.0
        %1771 = vmatprep.subr.mxu0 0.0
        %1772 = vmatpush1.msra.mxu0 0.0
        %1773 = vmatprep.subr.mxu0 0.0
        %1774 = vmatpush1.msra.mxu0 0.0
        %1775 = vmatprep.subr.mxu0 0.0
        %1776 = vmatpush1.msra.mxu0 0.0
        %1777 = vmatprep.subr.mxu0 0.0
        %1778 = vmatpush1.msra.mxu0 0.0
        %1779 = vmatprep.subr.mxu0 0.0
        %1780 = vmatpush1.msra.mxu0 0.0
        %1781 = vmatprep.subr.mxu0 0.0
        %1782 = vmatpush1.msra.mxu0 0.0
        %1783 = vmatprep.subr.mxu0 0.0
        %1784 = vmatpush1.msra.mxu0 0.0
        %1785 = vmatprep.subr.mxu0 0.0
        %1786 = vmatpush1.msra.mxu0 0.0
        %1787 = vmatprep.subr.mxu0 0.0
        %1788 = vmatpush1.msra.mxu0 0.0
        %1789 = vmatprep.subr.mxu0 0.0
        %1790 = vmatpush1.msra.mxu0 0.0
        %1791 = vmatprep.subr.mxu0 0.0
        %1792 = vmatpush1.msra.mxu0 0.0
        %1793 = vmatprep.subr.mxu0 0.0
        %1794 = vmatpush1.msra.mxu0 0.0
        %1795 = vmatprep.subr.mxu0 0.0
        %1796 = vmatpush1.msra.mxu0 0.0
        %1797 = vmatprep.subr.mxu0 0.0
        %1798 = vmatpush1.msra.mxu0 0.0
        %1799 = vmatprep.subr.mxu0 0.0
        %1800 = vmatpush1.msra.mxu0 0.0
        %1801 = vmatprep.subr.mxu0 0.0
        %1802 = vmatpush1.msra.mxu0 0.0
        %1803 = vmatprep.subr.mxu0 0.0
        %1804 = vmatpush1.msra.mxu0 0.0
        %1805 = vmatprep.mubr.f32.mxu0 0.0
        %1806 = vmatmul.mubr.f32.gmra.mrb[0].mxu0 %v1724
        %v1807 = vpop.f32.mrb[0].mxu0
        %v1808 = vadd.f32 %v1695, %v1807
        %v1809 = vpop.f32.mrb[0].mxu0
        %1810 = vmatprep.mubr.f32.mxu0 0.0
        %1811 = vmatmul.mubr.f32.gmra.mrb[0].mxu0 %v1727
        %v1812 = vpop.f32.mrb[0].mxu0
        %v1813 = vadd.f32 %v1700, %v1812
        %v1814 = vpop.f32.mrb[0].mxu0
        %1815 = vmatprep.mubr.f32.mxu0 0.0
        %1816 = vmatmul.mubr.f32.gmra.mrb[0].mxu0 %v1730
        %v1817 = vpop.f32.mrb[0].mxu0
        %v1818 = vadd.f32 %v1705, %v1817
        %v1819 = vpop.f32.mrb[0].mxu0
        %1820 = vmatprep.mubr.f32.mxu0 0.0
        %1821 = vmatmul.mubr.f32.gmra.mrb[0].mxu0 %v1733
        %v1822 = vpop.f32.mrb[0].mxu0
        %v1823 = vadd.f32 %v1710, %v1822
        %v1824 = vpop.f32.mrb[0].mxu0
        %1825 = vmatprep.mubr.f32.mxu0 0.0
        %1826 = vmatmul.mubr.f32.gmra.mrb[0].mxu0 %v1736
        %v1827 = vpop.f32.mrb[0].mxu0
        %v1828 = vadd.f32 %v1715, %v1827
        %v1829 = vpop.f32.mrb[0].mxu0
        %1830 = vmatprep.mubr.f32.mxu0 0.0
        %1831 = vmatmul.mubr.f32.gmra.mrb[0].mxu0 %v1739
        %v1832 = vpop.f32.mrb[0].mxu0
        %v1833 = vadd.f32 %v1720, %v1832
        %v1834 = vpop.f32.mrb[0].mxu0
        %1835 = vdwg.mxu0
        %v1836 = vld [vmem:[%s7] sm:$0xff]
        %v1837 = vld [vmem:[%s7 + $0x8] sm:$0xff]
        %v1838 = vld [vmem:[%s7 + $0x10] sm:$0xff]
        %v1839 = vld [vmem:[%s7 + $0x18] sm:$0xff]
        %v1840 = vld [vmem:[%s7 + $0x20] sm:$0xff]
        %v1841 = vld [vmem:[%s7 + $0x28] sm:$0xff]
        %1843 = vset.pattern.permute.xlu0 0
        %1844 = vperm.xlu0 %1843, %v1836
        %v1845 = vpop.permute.xlu0 %1844
        %1848 = vset.pattern.permute.xlu0 0
        %1849 = vperm.xlu0 %1848, %v1837
        %v1850 = vpop.permute.xlu0 %1849
        %1853 = vset.pattern.permute.xlu0 0
        %1854 = vperm.xlu0 %1853, %v1838
        %v1855 = vpop.permute.xlu0 %1854
        %1858 = vset.pattern.permute.xlu0 0
        %1859 = vperm.xlu0 %1858, %v1839
        %v1860 = vpop.permute.xlu0 %1859
        %1863 = vset.pattern.permute.xlu0 0
        %1864 = vperm.xlu0 %1863, %v1840
        %v1865 = vpop.permute.xlu0 %1864
        %1868 = vset.pattern.permute.xlu0 0
        %1869 = vperm.xlu0 %1868, %v1841
        %v1870 = vpop.permute.xlu0 %1869
        %v1872 = vadd.f32 %v1808, %v1845
        %v1873 = vadd.f32 %v1813, %v1850
        %v1874 = vadd.f32 %v1818, %v1855
        %v1875 = vadd.f32 %v1823, %v1860
        %v1876 = vadd.f32 %v1828, %v1865
        %v1877 = vadd.f32 %v1833, %v1870
        %v1878 = vadd.f32 %v461, %v1872
        %v1879 = vadd.f32 %v462, %v1873
        %1880 = vst [vmem:[%s451] sm:$0xff] %v1878
        %1881 = vst [vmem:[%s451 + $0x8] sm:$0xff] %v1879
        %1882 = vst [vmem:[%s444] sm:$0xff] %v1874
        %1883 = vst [vmem:[%s444 + $0x8] sm:$0xff] %v1875
        %1884 = vst [vmem:[%s444 + $0x10] sm:$0xff] %v1876
        %1885 = vst [vmem:[%s444 + $0x18] sm:$0xff] %v1877
        %s1886 = sand.u32 %s253, 1
        %s1887 = scalar_lea.sflag [#allocation4], %s1886
        %s1888 = sand.u32 %s253, 1
        %s1889 = smul.addr %s1888, 32
        %s1890 = scalar_lea.vmem [#allocation3], %s1889
        %s1891 = sand.u32 %s281, 1
        %s1892 = scalar_lea.sflag [#allocation6], %s1891
        %s1893 = sand.u32 %s281, 1
        %s1894 = smul.addr %s1893, 16
        %s1895 = scalar_lea.vmem [#allocation5], %s1894
        // Predicated region
        $region95: #{tpu_custom_call.1} parent=89 // pred_check
          %p1896 = pneg %p263
        $region96: #{tpu_custom_call.1} parent=89 // pred_check_branch
          %1898 = sbr.rel (%p1896) target = $region98
        $region97: #{tpu_custom_call.1} parent=89 // pred_region
          %s1900 = ssub.s32 512, 512
          %1901 = vsyncadd %s1887, %s1900
          %s1902 = smul.addr %s32, 8
          %s1903 = sadd.s32 %s33, %s1902
          %s1904 = smul.addr %s1903, 128
          %s1905 = scalar_lea.hbm %s9, %s1904
          %s1906 = sshll.u32 %s1890, 4
          %s1907 = int_to_ptr.vmem [resolvable:$true] %s1906
          %1912 = dma.vmem_to_hbm [thread:$0]  %s1907, 512, %s1905, %s1887, 128, 256, 8
        $region98: #{tpu_custom_call.1} parent=89 // pred_fallthru
          _
        // Predicated region
        $region99: #{tpu_custom_call.1} parent=89 // pred_check
          %p1913 = pneg %p291
        $region100: #{tpu_custom_call.1} parent=89 // pred_check_branch
          %1915 = sbr.rel (%p1913) target = $region102
        $region101: #{tpu_custom_call.1} parent=89 // pred_region
          %s1917 = ssub.s32 256, 256
          %1918 = vsyncadd %s1892, %s1917
          %s1919 = smul.addr %s32, 4
          %s1920 = sadd.s32 %s33, %s1919
          %s1921 = smul.addr %s1920, 128
          %s1922 = scalar_lea.hbm %s10, %s1921
          %s1923 = sshll.u32 %s1895, 4
          %s1924 = int_to_ptr.vmem [resolvable:$true] %s1923
          %1929 = dma.vmem_to_hbm [thread:$0]  %s1924, 256, %s1922, %s1892, 128, 256, 8
        $region102: #{tpu_custom_call.1} parent=89 // pred_fallthru
          _
      $region90: #{tpu_custom_call.1} parent=5 // pred_fallthru
        _
      %p1930 = scmp.le.s32.totalorder 2, %s23
      // Predicated region
      $region103: #{tpu_custom_call.1} parent=5 // pred_check
        %p1931 = pneg %p1930
      $region104: #{tpu_custom_call.1} parent=5 // pred_check_branch
        %1933 = sbr.rel (%p1931) target = $region106
      $region105: #{tpu_custom_call.1} parent=5 // pred_region
        %s1934 = ssub.s32 %s23, 2
        // Predicated region
        $region107: #{tpu_custom_call.1} parent=105 // pred_check
          %p1935 = pneg %p269
        $region108: #{tpu_custom_call.1} parent=105 // pred_check_branch
          %1937 = sbr.rel (%p1935) target = $region110
        $region109: #{tpu_custom_call.1} parent=105 // pred_region
          %s1938 = sand.u32 %s254, 1
          %s1939 = scalar_lea.sflag [#allocation4], %s1938
          %s1940 = sand.u32 %s254, 1
          %s1941 = smul.addr %s1940, 32
          %s1942 = scalar_lea.vmem [#allocation3], %s1941
          %1943 = dma.done %s1939, 512
        $region110: #{tpu_custom_call.1} parent=105 // pred_fallthru
          _
        // Predicated region
        $region111: #{tpu_custom_call.1} parent=105 // pred_check
          %p1944 = pneg %p297
        $region112: #{tpu_custom_call.1} parent=105 // pred_check_branch
          %1946 = sbr.rel (%p1944) target = $region114
        $region113: #{tpu_custom_call.1} parent=105 // pred_region
          %s1947 = sand.u32 %s282, 1
          %s1948 = scalar_lea.sflag [#allocation6], %s1947
          %s1949 = sand.u32 %s282, 1
          %s1950 = smul.addr %s1949, 16
          %s1951 = scalar_lea.vmem [#allocation5], %s1950
          %1952 = dma.done %s1948, 256
        $region114: #{tpu_custom_call.1} parent=105 // pred_fallthru
          _
      $region106: #{tpu_custom_call.1} parent=5 // pred_fallthru
        _
    $region6: #{tpu_custom_call.1} parent=1 // loop_footer
      %s27 = sadd.s32 1, %s23
    $region7: #{tpu_custom_call.1} parent=1 // loop_footer_branch
      %22 = sbr.rel target = $region3
    $region8: #{tpu_custom_call.1} parent=1 // loop_exit
      _
    %1953 = vsyncpa [#allocation4], 1
    %s1954 = scalar_lea.sflag [#allocation4], 1
    %1955 = vsyncpa %s1954, 1
    %1956 = vsyncpa [#allocation6], 1
    %s1957 = scalar_lea.sflag [#allocation6], 1
    %1958 = vsyncpa %s1957, 1

</llo_original>
